<compile_context>
chip_gen: v5e
topology: v5e:2x2
jax: 0.10.0
libtpu: 0.0.40
codegen_flags: <defaults>
</compile_context>

<pallas_src>
import functools

import jax
import jax.numpy as jnp
from jax.experimental import pallas as pl
from jax.experimental.pallas import tpu as pltpu


# ----------------------------- Pallas kernel ------------------------------ #
def mbconv_kernel(x_ref, planes_ref, w_exp_ref, w_se1_ref, w_se2_ref, w_proj_ref,
                  b_se_ref, out_ref, *, H, W):
    HW = H * W
    Bb = x_ref.shape[0]                 # batch block (static)
    Cexp = w_exp_ref.shape[0]
    Cout = w_proj_ref.shape[0]
    Cse = w_se1_ref.shape[0]
    inv_hw = 1.0 / HW

    w_exp = w_exp_ref[...]              # (Cexp, Cin), BN1 scale folded
    b_se = b_se_ref[...]                # (Cexp, 2): col0 = SE bias1 (padded), col1 = SE bias2

    # ---- per-image: 1x1 expansion + depthwise 3x3 (static unroll over the block) ----
    # TODO(synk): for very large batch blocks switch the unrolled loop to a batched (3-D)
    # formulation; at the default block sizes the unroll is small.
    h2_imgs, pooled_cols = [], []
    for b in range(Bb):
        xb = x_ref[b]                                                   # (Cin, HW)
        hb = jnp.dot(w_exp, xb, preferred_element_type=jnp.float32)     # 1x1 expansion (MXU)
        hb = jnp.maximum(hb + planes_ref[9], 0.0)                       # BN1 shift (pre-bcast) + ReLU

        # depthwise 3x3, stride 1, pad 1: 8 lane rolls; each tap plane already holds
        # (BN2-scaled tap weight) * (zero-padding edge mask) broadcast along lanes.
        acc = hb * planes_ref[4]                                        # center tap
        for di in range(3):
            for dj in range(3):
                if di == 1 and dj == 1:
                    continue
                off = (di - 1) * W + (dj - 1)                           # flat lane offset of source
                src = pltpu.roll(hb, (-off) % HW, axis=1)               # src[s] = hb[s + off]
                acc = acc + src * planes_ref[di * 3 + dj]
        h2b = jnp.maximum(acc + planes_ref[10], 0.0)                    # BN2 shift + ReLU
        h2_imgs.append(h2b)
        pooled_cols.append(jnp.sum(h2b, axis=1, keepdims=True) * inv_hw)  # (Cexp, 1) avg pool

    # ---- squeeze-excitation, batched over the block (matmul N = Bb, not 1) ----
    pooled = pooled_cols[0] if Bb == 1 else jnp.concatenate(pooled_cols, axis=1)  # (Cexp, Bb)
    s1 = jnp.dot(w_se1_ref[...], pooled, preferred_element_type=jnp.float32) + b_se[:Cse, 0:1]
    s2 = jnp.dot(w_se2_ref[...], s1, preferred_element_type=jnp.float32) + b_se[:, 1:2]
    scale = jax.nn.sigmoid(jnp.maximum(s2, 0.0))                        # sigmoid(relu(.)), (Cexp, Bb)

    # ---- projection: fold per-image SE scale into the (Cout, Cexp) weights ----
    w_proj = w_proj_ref[...]                                            # BN3 scale folded
    for b in range(Bb):
        w_ps = w_proj * scale[:, b][None, :]                            # (Cout, Cexp), tiny
        yb = jnp.dot(w_ps, h2_imgs[b], preferred_element_type=jnp.float32)
        out_ref[b] = yb + planes_ref[11][:Cout] + x_ref[b]              # BN3 shift + residual


# ------------------------------ Wrapper ------------------------------------ #
@functools.partial(jax.jit, static_argnames=("batch_block",))
def mbconv_forward(x_nchw, kp, batch_block=None):
    """x_nchw: [B, Cin, H, W] float32 (PyTorch layout). Returns NCHW output."""
    B, Cin, H, W = x_nchw.shape
    HW = H * W
    Cexp = kp['w_exp'].shape[0]
    Cout = kp['w_proj'].shape[0]
    Cse = kp['w_se1'].shape[0]

    # Kernel hard-codes kernel_size=3, stride=1, padding=1 and the residual path; fail loudly.
    assert Cin == Cout, "kernel assumes use_residual (in_channels == out_channels, stride == 1)"
    assert kp['planes'].shape == (12, Cexp, HW), "packed planes were built for a different H, W"

    if batch_block is None:
        # One fat grid step amortizes per-step overhead (best on single-TC v5e/v6e); cap the
        # static unroll.  On v7x pass batch_block <= B // 2 so both TensorCores get a block.
        batch_block = min(B, 8)
        while B % batch_block:
            batch_block -= 1
    assert B % batch_block == 0

    x_flat = x_nchw.reshape(B, Cin, HW)                 # free reshape; HW stays on the lane axis

    def inv(shape):                                     # grid-invariant block (DMA'd once)
        return pl.BlockSpec(shape, lambda b: (0,) * len(shape))

    grid_spec = pltpu.PrefetchScalarGridSpec(
        num_scalar_prefetch=0,
        grid=(B // batch_block,),
        in_specs=[
            pl.BlockSpec((batch_block, Cin, HW), lambda b: (b, 0, 0)),
            inv((12, Cexp, HW)),                        # tap-weight*mask planes + BN shifts
            inv((Cexp, Cin)),                           # w_exp  (BN1 scale folded)
            inv((Cse, Cexp)),                           # w_se1
            inv((Cexp, Cse)),                           # w_se2
            inv((Cout, Cexp)),                          # w_proj (BN3 scale folded)
            inv((Cexp, 2)),                             # packed SE biases
        ],
        out_specs=pl.BlockSpec((batch_block, Cout, HW), lambda b: (b, 0, 0)),
    )
    out = pl.pallas_call(
        functools.partial(mbconv_kernel, H=H, W=W),
        out_shape=jax.ShapeDtypeStruct((B, Cout, HW), jnp.float32),
        grid_spec=grid_spec,
        compiler_params=pltpu.CompilerParams(dimension_semantics=("parallel",)),
    )(x_flat, kp['planes'], kp['w_exp'], kp['w_se1'], kp['w_se2'], kp['w_proj'], kp['b_se'])
    return out.reshape(B, Cout, H, W)


# ----------------------- Param prep (BN + mask folding) --------------------- #
def prepare_kernel_params(p, H, W, eps=1e-5):
    """Fold eval-mode BN scales into the conv weights, fold the 3x3 zero-padding edge masks
    into the depthwise tap weights, and pre-broadcast all per-channel shifts along H*W."""
    HW = H * W

    def scale_shift(bn):
        gamma, beta, mean, var = bn
        s = gamma / jnp.sqrt(var + eps)
        return s, beta - mean * s

    s1, sh1 = scale_shift(p['bn1'])
    s2, sh2 = scale_shift(p['bn2'])
    s3, sh3 = scale_shift(p['bn3'])
    Cexp = p['w_exp'].shape[0]
    Cse = p['w_se1'].shape[0]

    # Per-lane validity of each of the 9 taps (zero padding == masked-off taps).
    lane = jnp.arange(HW)
    row, col = lane // W, lane % W
    ones = jnp.ones((HW,), jnp.float32)
    row_ok = {0: (row >= 1).astype(jnp.float32), 1: ones, 2: (row <= H - 2).astype(jnp.float32)}
    col_ok = {0: (col >= 1).astype(jnp.float32), 1: ones, 2: (col <= W - 2).astype(jnp.float32)}
    tap_masks = jnp.stack([row_ok[di] * col_ok[dj] for di in range(3) for dj in range(3)])  # (9, HW)

    w_dw = p['w_dw'] * s2[:, None, None]                          # (Cexp, 3, 3), BN2 scale folded
    w_dw = jnp.transpose(w_dw, (1, 2, 0)).reshape(9, Cexp)        # tap-major (9, Cexp)
    tap_planes = w_dw[:, :, None] * tap_masks[:, None, :]         # (9, Cexp, HW)

    def bcast(v):                                                 # (c,) -> (Cexp, HW), zero-padded
        v = jnp.pad(v, (0, Cexp - v.shape[0]))
        return jnp.broadcast_to(v[:, None], (Cexp, HW))

    # TODO(synk): for large HW ship the shift/tap planes at lane width 128 (or as columns)
    # instead of full HW to bound the packed-parameter footprint.
    planes = jnp.concatenate(
        [tap_planes, bcast(sh1)[None], bcast(sh2)[None], bcast(sh3)[None]], axis=0)  # (12, Cexp, HW)

    b_se = jnp.stack([jnp.pad(p['b_se1'], (0, Cexp - Cse)), p['b_se2']], axis=1)     # (Cexp, 2)

    return dict(
        planes=planes,
        w_exp=p['w_exp'] * s1[:, None],               # (Cexp, Cin), BN1 scale folded
        w_se1=p['w_se1'], w_se2=p['w_se2'],           # (Cse, Cexp), (Cexp, Cse)
        b_se=b_se,
        w_proj=p['w_proj'] * s3[:, None],             # (Cout, Cexp), BN3 scale folded
    )


# --------------------------- Pure-JAX reference ----------------------------- #
def mbconv_ref(x, p, eps=1e-5):
    """Unfused NCHW reference using the raw (unfolded) params."""
    B, Cin, H, W = x.shape

    def bn(h, stats):
        gamma, beta, mean, var = stats
        s = gamma / jnp.sqrt(var + eps)
        return h * s[None, :, None, None] + (beta - mean * s)[None, :, None, None]

    h = jnp.einsum('bchw,ec->behw', x, p['w_exp'])
    h = jnp.maximum(bn(h, p['bn1']), 0.0)

    hp = jnp.pad(h, ((0, 0), (0, 0), (1, 1), (1, 1)))
    acc = jnp.zeros_like(h)
    for di in range(3):
        for dj in range(3):
            acc = acc + hp[:, :, di:di + H, dj:dj + W] * p['w_dw'][None, :, di, dj, None, None]
    h2 = jnp.maximum(bn(acc, p['bn2']), 0.0)

    pooled = jnp.mean(h2, axis=(2, 3))                 # (B, Cexp)
    s1 = pooled @ p['w_se1'].T + p['b_se1'][None, :]
    s2 = s1 @ p['w_se2'].T + p['b_se2'][None, :]
    scale = jax.nn.sigmoid(jnp.maximum(s2, 0.0))
    h3 = h2 * scale[:, :, None, None]

    y = jnp.einsum('bchw,oc->bohw', h3, p['w_proj'])
    y = bn(y, p['bn3'])
    return y + x                                       # residual; StochasticDepth(eval) = identity


# ------------------------------ Param init ---------------------------------- #
def make_raw_params(key, cin, cout, cexp, cse):
    ks = jax.random.split(key, 10)

    def bn(k, c):
        k1, k2, k3, k4 = jax.random.split(k, 4)
        gamma = jax.random.uniform(k1, (c,), jnp.float32, 0.5, 1.5)
        beta = 0.1 * jax.random.normal(k2, (c,), jnp.float32)
        mean = 0.1 * jax.random.normal(k3, (c,), jnp.float32)
        var = jax.random.uniform(k4, (c,), jnp.float32, 0.5, 1.5)
        return (gamma, beta, mean, var)

    return dict(
        w_exp=0.1 * jax.random.normal(ks[0], (cexp, cin), jnp.float32),
        bn1=bn(ks[1], cexp),
        w_dw=0.1 * jax.random.normal(ks[2], (cexp, 3, 3), jnp.float32),
        bn2=bn(ks[3], cexp),
        w_se1=0.1 * jax.random.normal(ks[4], (cse, cexp), jnp.float32),
        b_se1=0.1 * jax.random.normal(ks[5], (cse,), jnp.float32),
        w_se2=0.1 * jax.random.normal(ks[6], (cexp, cse), jnp.float32),
        b_se2=0.1 * jax.random.normal(ks[7], (cexp,), jnp.float32),
        w_proj=0.1 * jax.random.normal(ks[8], (cout, cexp), jnp.float32),
        bn3=bn(ks[9], cout),
    )


if __name__ == "__main__":
    # MBConvBlock(in_channels=8, out_channels=8, kernel_size=3, stride=1, padding=1,
    #             activation='relu', expansion_ratio=4, reduction_ratio=4) -- eval mode
    B, Cin, H, W = 2, 8, 16, 16
    Cout = 8
    expansion_ratio = 4
    reduction_ratio = 4
    Cexp = Cin * expansion_ratio          # 32
    Cse = Cexp // reduction_ratio         # 8

    key = jax.random.PRNGKey(0)
    kx, kp = jax.random.split(key)
    x = jax.random.normal(kx, (B, Cin, H, W), jnp.float32)   # NCHW, like PyTorch
    raw = make_raw_params(kp, Cin, Cout, Cexp, Cse)
    kparams = prepare_kernel_params(raw, H, W)

    out = mbconv_forward(x, kparams)      # single grid step covering the whole batch
    jax.block_until_ready(out)

    ref = mbconv_ref(x, raw)
    err = float(jnp.max(jnp.abs(out - ref)))
    assert out.shape == (B, Cout, H, W), out.shape
    assert err < 1e-3, f"max abs err {err}"
    print("KERNEL_OK")
</pallas_src>

<mosaic_0001>
module attributes {stable_mosaic.version = 11 : i64} {
  func.func @mbconv_kernel(%arg0: i32, %arg1: memref<2x8x256xf32, #tpu.memory_space<vmem>>, %arg2: memref<12x32x256xf32, #tpu.memory_space<vmem>>, %arg3: memref<32x8xf32, #tpu.memory_space<vmem>>, %arg4: memref<8x32xf32, #tpu.memory_space<vmem>>, %arg5: memref<32x8xf32, #tpu.memory_space<vmem>>, %arg6: memref<8x32xf32, #tpu.memory_space<vmem>>, %arg7: memref<32x2xf32, #tpu.memory_space<vmem>>, %arg8: memref<2x8x256xf32, #tpu.memory_space<vmem>>) attributes {dimension_semantics = [#tpu.dimension_semantics<parallel>], iteration_bounds = array<i64: 1>, scalar_prefetch = 0 : i64, scratch_operands = 0 : i64, tpu.core_type = #tpu.core_type<tc>, window_params = [{transform_indices = @transform_0, window_bounds = array<i64: 2, 8, 256>}, {pipeline_mode = #tpu.pipeline_mode<synchronous>, transform_indices = @transform_1, window_bounds = array<i64: 12, 32, 256>}, {pipeline_mode = #tpu.pipeline_mode<synchronous>, transform_indices = @transform_2, window_bounds = array<i64: 32, 8>}, {pipeline_mode = #tpu.pipeline_mode<synchronous>, transform_indices = @transform_3, window_bounds = array<i64: 8, 32>}, {pipeline_mode = #tpu.pipeline_mode<synchronous>, transform_indices = @transform_4, window_bounds = array<i64: 32, 8>}, {pipeline_mode = #tpu.pipeline_mode<synchronous>, transform_indices = @transform_5, window_bounds = array<i64: 8, 32>}, {pipeline_mode = #tpu.pipeline_mode<synchronous>, transform_indices = @transform_6, window_bounds = array<i64: 32, 2>}, {transform_indices = @transform_7, window_bounds = array<i64: 2, 8, 256>}]} {
    %c0 = arith.constant 0 : index
    %c0_0 = arith.constant 0 : index
    %0 = vector.load %arg3[%c0, %c0_0] : memref<32x8xf32, #tpu.memory_space<vmem>>, vector<32x8xf32>
    %c0_1 = arith.constant 0 : index
    %c0_2 = arith.constant 0 : index
    %1 = vector.load %arg7[%c0_1, %c0_2] : memref<32x2xf32, #tpu.memory_space<vmem>>, vector<32x2xf32>
    %c0_3 = arith.constant 0 : index
    %c0_4 = arith.constant 0 : index
    %c0_5 = arith.constant 0 : index
    %2 = vector.load %arg1[%c0_3, %c0_4, %c0_5] : memref<2x8x256xf32, #tpu.memory_space<vmem>>, vector<1x8x256xf32>
    %3 = vector.shape_cast %2 : vector<1x8x256xf32> to vector<8x256xf32>
    %cst = arith.constant dense<0.000000e+00> : vector<32x256xf32>
    %4 = tpu.matmul %0, %3, %cst {dimension_numbers = #tpu.dot_dimension_numbers<[1], [0], [0], [1], [0, 0, 1, 1], [], []>} : vector<32x8xf32>, vector<8x256xf32>, vector<32x256xf32> -> vector<32x256xf32>
    %c9 = arith.constant 9 : index
    %c0_6 = arith.constant 0 : index
    %c0_7 = arith.constant 0 : index
    %5 = vector.load %arg2[%c9, %c0_6, %c0_7] : memref<12x32x256xf32, #tpu.memory_space<vmem>>, vector<1x32x256xf32>
    %6 = vector.shape_cast %5 : vector<1x32x256xf32> to vector<32x256xf32>
    %7 = arith.addf %4, %6 : vector<32x256xf32>
    %cst_8 = arith.constant 0.000000e+00 : f32
    %8 = vector.broadcast %cst_8 : f32 to vector<32x256xf32>
    %9 = arith.maximumf %7, %8 : vector<32x256xf32>
    %c4 = arith.constant 4 : index
    %c0_9 = arith.constant 0 : index
    %c0_10 = arith.constant 0 : index
    %10 = vector.load %arg2[%c4, %c0_9, %c0_10] : memref<12x32x256xf32, #tpu.memory_space<vmem>>, vector<1x32x256xf32>
    %11 = vector.shape_cast %10 : vector<1x32x256xf32> to vector<32x256xf32>
    %12 = arith.mulf %9, %11 : vector<32x256xf32>
    %c17_i32 = arith.constant 17 : i32
    %13 = tpu.dynamic_rotate %9 by %c17_i32 dim 1 : vector<32x256xf32>, i32 -> vector<32x256xf32>
    %c0_11 = arith.constant 0 : index
    %c0_12 = arith.constant 0 : index
    %c0_13 = arith.constant 0 : index
    %14 = vector.load %arg2[%c0_11, %c0_12, %c0_13] : memref<12x32x256xf32, #tpu.memory_space<vmem>>, vector<1x32x256xf32>
    %15 = vector.shape_cast %14 : vector<1x32x256xf32> to vector<32x256xf32>
    %16 = arith.mulf %13, %15 : vector<32x256xf32>
    %17 = arith.addf %12, %16 : vector<32x256xf32>
    %c16_i32 = arith.constant 16 : i32
    %18 = tpu.dynamic_rotate %9 by %c16_i32 dim 1 : vector<32x256xf32>, i32 -> vector<32x256xf32>
    %c1 = arith.constant 1 : index
    %c0_14 = arith.constant 0 : index
    %c0_15 = arith.constant 0 : index
    %19 = vector.load %arg2[%c1, %c0_14, %c0_15] : memref<12x32x256xf32, #tpu.memory_space<vmem>>, vector<1x32x256xf32>
    %20 = vector.shape_cast %19 : vector<1x32x256xf32> to vector<32x256xf32>
    %21 = arith.mulf %18, %20 : vector<32x256xf32>
    %22 = arith.addf %17, %21 : vector<32x256xf32>
    %c15_i32 = arith.constant 15 : i32
    %23 = tpu.dynamic_rotate %9 by %c15_i32 dim 1 : vector<32x256xf32>, i32 -> vector<32x256xf32>
    %c2 = arith.constant 2 : index
    %c0_16 = arith.constant 0 : index
    %c0_17 = arith.constant 0 : index
    %24 = vector.load %arg2[%c2, %c0_16, %c0_17] : memref<12x32x256xf32, #tpu.memory_space<vmem>>, vector<1x32x256xf32>
    %25 = vector.shape_cast %24 : vector<1x32x256xf32> to vector<32x256xf32>
    %26 = arith.mulf %23, %25 : vector<32x256xf32>
    %27 = arith.addf %22, %26 : vector<32x256xf32>
    %c1_i32 = arith.constant 1 : i32
    %28 = tpu.dynamic_rotate %9 by %c1_i32 dim 1 : vector<32x256xf32>, i32 -> vector<32x256xf32>
    %c3 = arith.constant 3 : index
    %c0_18 = arith.constant 0 : index
    %c0_19 = arith.constant 0 : index
    %29 = vector.load %arg2[%c3, %c0_18, %c0_19] : memref<12x32x256xf32, #tpu.memory_space<vmem>>, vector<1x32x256xf32>
    %30 = vector.shape_cast %29 : vector<1x32x256xf32> to vector<32x256xf32>
    %31 = arith.mulf %28, %30 : vector<32x256xf32>
    %32 = arith.addf %27, %31 : vector<32x256xf32>
    %c255_i32 = arith.constant 255 : i32
    %33 = tpu.dynamic_rotate %9 by %c255_i32 dim 1 : vector<32x256xf32>, i32 -> vector<32x256xf32>
    %c5 = arith.constant 5 : index
    %c0_20 = arith.constant 0 : index
    %c0_21 = arith.constant 0 : index
    %34 = vector.load %arg2[%c5, %c0_20, %c0_21] : memref<12x32x256xf32, #tpu.memory_space<vmem>>, vector<1x32x256xf32>
    %35 = vector.shape_cast %34 : vector<1x32x256xf32> to vector<32x256xf32>
    %36 = arith.mulf %33, %35 : vector<32x256xf32>
    %37 = arith.addf %32, %36 : vector<32x256xf32>
    %c241_i32 = arith.constant 241 : i32
    %38 = tpu.dynamic_rotate %9 by %c241_i32 dim 1 : vector<32x256xf32>, i32 -> vector<32x256xf32>
    %c6 = arith.constant 6 : index
    %c0_22 = arith.constant 0 : index
    %c0_23 = arith.constant 0 : index
    %39 = vector.load %arg2[%c6, %c0_22, %c0_23] : memref<12x32x256xf32, #tpu.memory_space<vmem>>, vector<1x32x256xf32>
    %40 = vector.shape_cast %39 : vector<1x32x256xf32> to vector<32x256xf32>
    %41 = arith.mulf %38, %40 : vector<32x256xf32>
    %42 = arith.addf %37, %41 : vector<32x256xf32>
    %c240_i32 = arith.constant 240 : i32
    %43 = tpu.dynamic_rotate %9 by %c240_i32 dim 1 : vector<32x256xf32>, i32 -> vector<32x256xf32>
    %c7 = arith.constant 7 : index
    %c0_24 = arith.constant 0 : index
    %c0_25 = arith.constant 0 : index
    %44 = vector.load %arg2[%c7, %c0_24, %c0_25] : memref<12x32x256xf32, #tpu.memory_space<vmem>>, vector<1x32x256xf32>
    %45 = vector.shape_cast %44 : vector<1x32x256xf32> to vector<32x256xf32>
    %46 = arith.mulf %43, %45 : vector<32x256xf32>
    %47 = arith.addf %42, %46 : vector<32x256xf32>
    %c239_i32 = arith.constant 239 : i32
    %48 = tpu.dynamic_rotate %9 by %c239_i32 dim 1 : vector<32x256xf32>, i32 -> vector<32x256xf32>
    %c8 = arith.constant 8 : index
    %c0_26 = arith.constant 0 : index
    %c0_27 = arith.constant 0 : index
    %49 = vector.load %arg2[%c8, %c0_26, %c0_27] : memref<12x32x256xf32, #tpu.memory_space<vmem>>, vector<1x32x256xf32>
    %50 = vector.shape_cast %49 : vector<1x32x256xf32> to vector<32x256xf32>
    %51 = arith.mulf %48, %50 : vector<32x256xf32>
    %52 = arith.addf %47, %51 : vector<32x256xf32>
    %c10 = arith.constant 10 : index
    %c0_28 = arith.constant 0 : index
    %c0_29 = arith.constant 0 : index
    %53 = vector.load %arg2[%c10, %c0_28, %c0_29] : memref<12x32x256xf32, #tpu.memory_space<vmem>>, vector<1x32x256xf32>
    %54 = vector.shape_cast %53 : vector<1x32x256xf32> to vector<32x256xf32>
    %55 = arith.addf %52, %54 : vector<32x256xf32>
    %cst_30 = arith.constant 0.000000e+00 : f32
    %56 = vector.broadcast %cst_30 : f32 to vector<32x256xf32>
    %57 = arith.maximumf %55, %56 : vector<32x256xf32>
    %cst_31 = arith.constant dense<0.000000e+00> : vector<32xf32>
    %58 = vector.multi_reduction <add>, %57, %cst_31 [1] : vector<32x256xf32> to vector<32xf32>
    %59 = vector.shape_cast %58 : vector<32xf32> to vector<32x1xf32>
    %cst_32 = arith.constant 3.906250e-03 : f32
    %60 = vector.broadcast %cst_32 : f32 to vector<32x1xf32>
    %61 = arith.mulf %59, %60 : vector<32x1xf32>
    %c1_33 = arith.constant 1 : index
    %c0_34 = arith.constant 0 : index
    %c0_35 = arith.constant 0 : index
    %62 = vector.load %arg1[%c1_33, %c0_34, %c0_35] : memref<2x8x256xf32, #tpu.memory_space<vmem>>, vector<1x8x256xf32>
    %63 = vector.shape_cast %62 : vector<1x8x256xf32> to vector<8x256xf32>
    %cst_36 = arith.constant dense<0.000000e+00> : vector<32x256xf32>
    %64 = tpu.matmul %0, %63, %cst_36 {dimension_numbers = #tpu.dot_dimension_numbers<[1], [0], [0], [1], [0, 0, 1, 1], [], []>} : vector<32x8xf32>, vector<8x256xf32>, vector<32x256xf32> -> vector<32x256xf32>
    %c9_37 = arith.constant 9 : index
    %c0_38 = arith.constant 0 : index
    %c0_39 = arith.constant 0 : index
    %65 = vector.load %arg2[%c9_37, %c0_38, %c0_39] : memref<12x32x256xf32, #tpu.memory_space<vmem>>, vector<1x32x256xf32>
    %66 = vector.shape_cast %65 : vector<1x32x256xf32> to vector<32x256xf32>
    %67 = arith.addf %64, %66 : vector<32x256xf32>
    %cst_40 = arith.constant 0.000000e+00 : f32
    %68 = vector.broadcast %cst_40 : f32 to vector<32x256xf32>
    %69 = arith.maximumf %67, %68 : vector<32x256xf32>
    %c4_41 = arith.constant 4 : index
    %c0_42 = arith.constant 0 : index
    %c0_43 = arith.constant 0 : index
    %70 = vector.load %arg2[%c4_41, %c0_42, %c0_43] : memref<12x32x256xf32, #tpu.memory_space<vmem>>, vector<1x32x256xf32>
    %71 = vector.shape_cast %70 : vector<1x32x256xf32> to vector<32x256xf32>
    %72 = arith.mulf %69, %71 : vector<32x256xf32>
    %c17_i32_44 = arith.constant 17 : i32
    %73 = tpu.dynamic_rotate %69 by %c17_i32_44 dim 1 : vector<32x256xf32>, i32 -> vector<32x256xf32>
    %c0_45 = arith.constant 0 : index
    %c0_46 = arith.constant 0 : index
    %c0_47 = arith.constant 0 : index
    %74 = vector.load %arg2[%c0_45, %c0_46, %c0_47] : memref<12x32x256xf32, #tpu.memory_space<vmem>>, vector<1x32x256xf32>
    %75 = vector.shape_cast %74 : vector<1x32x256xf32> to vector<32x256xf32>
    %76 = arith.mulf %73, %75 : vector<32x256xf32>
    %77 = arith.addf %72, %76 : vector<32x256xf32>
    %c16_i32_48 = arith.constant 16 : i32
    %78 = tpu.dynamic_rotate %69 by %c16_i32_48 dim 1 : vector<32x256xf32>, i32 -> vector<32x256xf32>
    %c1_49 = arith.constant 1 : index
    %c0_50 = arith.constant 0 : index
    %c0_51 = arith.constant 0 : index
    %79 = vector.load %arg2[%c1_49, %c0_50, %c0_51] : memref<12x32x256xf32, #tpu.memory_space<vmem>>, vector<1x32x256xf32>
    %80 = vector.shape_cast %79 : vector<1x32x256xf32> to vector<32x256xf32>
    %81 = arith.mulf %78, %80 : vector<32x256xf32>
    %82 = arith.addf %77, %81 : vector<32x256xf32>
    %c15_i32_52 = arith.constant 15 : i32
    %83 = tpu.dynamic_rotate %69 by %c15_i32_52 dim 1 : vector<32x256xf32>, i32 -> vector<32x256xf32>
    %c2_53 = arith.constant 2 : index
    %c0_54 = arith.constant 0 : index
    %c0_55 = arith.constant 0 : index
    %84 = vector.load %arg2[%c2_53, %c0_54, %c0_55] : memref<12x32x256xf32, #tpu.memory_space<vmem>>, vector<1x32x256xf32>
    %85 = vector.shape_cast %84 : vector<1x32x256xf32> to vector<32x256xf32>
    %86 = arith.mulf %83, %85 : vector<32x256xf32>
    %87 = arith.addf %82, %86 : vector<32x256xf32>
    %c1_i32_56 = arith.constant 1 : i32
    %88 = tpu.dynamic_rotate %69 by %c1_i32_56 dim 1 : vector<32x256xf32>, i32 -> vector<32x256xf32>
    %c3_57 = arith.constant 3 : index
    %c0_58 = arith.constant 0 : index
    %c0_59 = arith.constant 0 : index
    %89 = vector.load %arg2[%c3_57, %c0_58, %c0_59] : memref<12x32x256xf32, #tpu.memory_space<vmem>>, vector<1x32x256xf32>
    %90 = vector.shape_cast %89 : vector<1x32x256xf32> to vector<32x256xf32>
    %91 = arith.mulf %88, %90 : vector<32x256xf32>
    %92 = arith.addf %87, %91 : vector<32x256xf32>
    %c255_i32_60 = arith.constant 255 : i32
    %93 = tpu.dynamic_rotate %69 by %c255_i32_60 dim 1 : vector<32x256xf32>, i32 -> vector<32x256xf32>
    %c5_61 = arith.constant 5 : index
    %c0_62 = arith.constant 0 : index
    %c0_63 = arith.constant 0 : index
    %94 = vector.load %arg2[%c5_61, %c0_62, %c0_63] : memref<12x32x256xf32, #tpu.memory_space<vmem>>, vector<1x32x256xf32>
    %95 = vector.shape_cast %94 : vector<1x32x256xf32> to vector<32x256xf32>
    %96 = arith.mulf %93, %95 : vector<32x256xf32>
    %97 = arith.addf %92, %96 : vector<32x256xf32>
    %c241_i32_64 = arith.constant 241 : i32
    %98 = tpu.dynamic_rotate %69 by %c241_i32_64 dim 1 : vector<32x256xf32>, i32 -> vector<32x256xf32>
    %c6_65 = arith.constant 6 : index
    %c0_66 = arith.constant 0 : index
    %c0_67 = arith.constant 0 : index
    %99 = vector.load %arg2[%c6_65, %c0_66, %c0_67] : memref<12x32x256xf32, #tpu.memory_space<vmem>>, vector<1x32x256xf32>
    %100 = vector.shape_cast %99 : vector<1x32x256xf32> to vector<32x256xf32>
    %101 = arith.mulf %98, %100 : vector<32x256xf32>
    %102 = arith.addf %97, %101 : vector<32x256xf32>
    %c240_i32_68 = arith.constant 240 : i32
    %103 = tpu.dynamic_rotate %69 by %c240_i32_68 dim 1 : vector<32x256xf32>, i32 -> vector<32x256xf32>
    %c7_69 = arith.constant 7 : index
    %c0_70 = arith.constant 0 : index
    %c0_71 = arith.constant 0 : index
    %104 = vector.load %arg2[%c7_69, %c0_70, %c0_71] : memref<12x32x256xf32, #tpu.memory_space<vmem>>, vector<1x32x256xf32>
    %105 = vector.shape_cast %104 : vector<1x32x256xf32> to vector<32x256xf32>
    %106 = arith.mulf %103, %105 : vector<32x256xf32>
    %107 = arith.addf %102, %106 : vector<32x256xf32>
    %c239_i32_72 = arith.constant 239 : i32
    %108 = tpu.dynamic_rotate %69 by %c239_i32_72 dim 1 : vector<32x256xf32>, i32 -> vector<32x256xf32>
    %c8_73 = arith.constant 8 : index
    %c0_74 = arith.constant 0 : index
    %c0_75 = arith.constant 0 : index
    %109 = vector.load %arg2[%c8_73, %c0_74, %c0_75] : memref<12x32x256xf32, #tpu.memory_space<vmem>>, vector<1x32x256xf32>
    %110 = vector.shape_cast %109 : vector<1x32x256xf32> to vector<32x256xf32>
    %111 = arith.mulf %108, %110 : vector<32x256xf32>
    %112 = arith.addf %107, %111 : vector<32x256xf32>
    %c10_76 = arith.constant 10 : index
    %c0_77 = arith.constant 0 : index
    %c0_78 = arith.constant 0 : index
    %113 = vector.load %arg2[%c10_76, %c0_77, %c0_78] : memref<12x32x256xf32, #tpu.memory_space<vmem>>, vector<1x32x256xf32>
    %114 = vector.shape_cast %113 : vector<1x32x256xf32> to vector<32x256xf32>
    %115 = arith.addf %112, %114 : vector<32x256xf32>
    %cst_79 = arith.constant 0.000000e+00 : f32
    %116 = vector.broadcast %cst_79 : f32 to vector<32x256xf32>
    %117 = arith.maximumf %115, %116 : vector<32x256xf32>
    %cst_80 = arith.constant dense<0.000000e+00> : vector<32xf32>
    %118 = vector.multi_reduction <add>, %117, %cst_80 [1] : vector<32x256xf32> to vector<32xf32>
    %119 = vector.shape_cast %118 : vector<32xf32> to vector<32x1xf32>
    %cst_81 = arith.constant 3.906250e-03 : f32
    %120 = vector.broadcast %cst_81 : f32 to vector<32x1xf32>
    %121 = arith.mulf %119, %120 : vector<32x1xf32>
    %122 = tpu.concatenate %61, %121 in 1 : vector<32x1xf32>, vector<32x1xf32> -> vector<32x2xf32>
    %c0_82 = arith.constant 0 : index
    %c0_83 = arith.constant 0 : index
    %123 = vector.load %arg4[%c0_82, %c0_83] : memref<8x32xf32, #tpu.memory_space<vmem>>, vector<8x32xf32>
    %cst_84 = arith.constant dense<0.000000e+00> : vector<8x2xf32>
    %124 = tpu.matmul %123, %122, %cst_84 {dimension_numbers = #tpu.dot_dimension_numbers<[1], [0], [0], [1], [0, 0, 1, 1], [], []>} : vector<8x32xf32>, vector<32x2xf32>, vector<8x2xf32> -> vector<8x2xf32>
    %125 = vector.extract_strided_slice %1 {offsets = [0, 0], sizes = [8, 1], strides = [1, 1]} : vector<32x2xf32> to vector<8x1xf32>
    %126 = vector.broadcast %125 : vector<8x1xf32> to vector<8x2xf32>
    %127 = arith.addf %124, %126 : vector<8x2xf32>
    %c0_85 = arith.constant 0 : index
    %c0_86 = arith.constant 0 : index
    %128 = vector.load %arg5[%c0_85, %c0_86] : memref<32x8xf32, #tpu.memory_space<vmem>>, vector<32x8xf32>
    %cst_87 = arith.constant dense<0.000000e+00> : vector<32x2xf32>
    %129 = tpu.matmul %128, %127, %cst_87 {dimension_numbers = #tpu.dot_dimension_numbers<[1], [0], [0], [1], [0, 0, 1, 1], [], []>} : vector<32x8xf32>, vector<8x2xf32>, vector<32x2xf32> -> vector<32x2xf32>
    %130 = vector.extract_strided_slice %1 {offsets = [0, 1], sizes = [32, 1], strides = [1, 1]} : vector<32x2xf32> to vector<32x1xf32>
    %131 = vector.broadcast %130 : vector<32x1xf32> to vector<32x2xf32>
    %132 = arith.addf %129, %131 : vector<32x2xf32>
    %cst_88 = arith.constant 0.000000e+00 : f32
    %133 = vector.broadcast %cst_88 : f32 to vector<32x2xf32>
    %134 = arith.maximumf %132, %133 : vector<32x2xf32>
    %135 = arith.negf %134 : vector<32x2xf32>
    %136 = math.exp %135 : vector<32x2xf32>
    %cst_89 = arith.constant 1.000000e+00 : f32
    %137 = vector.broadcast %cst_89 : f32 to vector<32x2xf32>
    %138 = arith.addf %137, %136 : vector<32x2xf32>
    %139 = arith.divf %137, %138 : vector<32x2xf32>
    %c0_90 = arith.constant 0 : index
    %c0_91 = arith.constant 0 : index
    %140 = vector.load %arg6[%c0_90, %c0_91] : memref<8x32xf32, #tpu.memory_space<vmem>>, vector<8x32xf32>
    %141 = vector.extract_strided_slice %139 {offsets = [0, 0], sizes = [32, 1], strides = [1, 1]} : vector<32x2xf32> to vector<32x1xf32>
    %142 = vector.shape_cast %141 : vector<32x1xf32> to vector<32xf32>
    %143 = vector.shape_cast %142 : vector<32xf32> to vector<1x32xf32>
    %144 = vector.broadcast %143 : vector<1x32xf32> to vector<8x32xf32>
    %145 = arith.mulf %140, %144 : vector<8x32xf32>
    %cst_92 = arith.constant dense<0.000000e+00> : vector<8x256xf32>
    %146 = tpu.matmul %145, %57, %cst_92 {dimension_numbers = #tpu.dot_dimension_numbers<[1], [0], [0], [1], [0, 0, 1, 1], [], []>} : vector<8x32xf32>, vector<32x256xf32>, vector<8x256xf32> -> vector<8x256xf32>
    %c11 = arith.constant 11 : index
    %c0_93 = arith.constant 0 : index
    %c0_94 = arith.constant 0 : index
    %147 = vector.load %arg2[%c11, %c0_93, %c0_94] : memref<12x32x256xf32, #tpu.memory_space<vmem>>, vector<1x32x256xf32>
    %148 = vector.shape_cast %147 : vector<1x32x256xf32> to vector<32x256xf32>
    %149 = vector.extract_strided_slice %148 {offsets = [0, 0], sizes = [8, 256], strides = [1, 1]} : vector<32x256xf32> to vector<8x256xf32>
    %150 = arith.addf %146, %149 : vector<8x256xf32>
    %c0_95 = arith.constant 0 : index
    %c0_96 = arith.constant 0 : index
    %c0_97 = arith.constant 0 : index
    %151 = vector.load %arg1[%c0_95, %c0_96, %c0_97] : memref<2x8x256xf32, #tpu.memory_space<vmem>>, vector<1x8x256xf32>
    %152 = vector.shape_cast %151 : vector<1x8x256xf32> to vector<8x256xf32>
    %153 = arith.addf %150, %152 : vector<8x256xf32>
    %c0_98 = arith.constant 0 : index
    %c0_99 = arith.constant 0 : index
    %c0_100 = arith.constant 0 : index
    %154 = vector.load %arg8[%c0_98, %c0_99, %c0_100] : memref<2x8x256xf32, #tpu.memory_space<vmem>>, vector<1x8x256xf32>
    %155 = vector.shape_cast %154 : vector<1x8x256xf32> to vector<8x256xf32>
    %156 = vector.shape_cast %153 : vector<8x256xf32> to vector<1x8x256xf32>
    tpu.vector_store %arg8[%c0_98, %c0_99, %c0_100], %156 {strides = array<i32>} : memref<2x8x256xf32, #tpu.memory_space<vmem>>, vector<1x8x256xf32>,
    %157 = vector.extract_strided_slice %139 {offsets = [0, 1], sizes = [32, 1], strides = [1, 1]} : vector<32x2xf32> to vector<32x1xf32>
    %158 = vector.shape_cast %157 : vector<32x1xf32> to vector<32xf32>
    %159 = vector.shape_cast %158 : vector<32xf32> to vector<1x32xf32>
    %160 = vector.broadcast %159 : vector<1x32xf32> to vector<8x32xf32>
    %161 = arith.mulf %140, %160 : vector<8x32xf32>
    %cst_101 = arith.constant dense<0.000000e+00> : vector<8x256xf32>
    %162 = tpu.matmul %161, %117, %cst_101 {dimension_numbers = #tpu.dot_dimension_numbers<[1], [0], [0], [1], [0, 0, 1, 1], [], []>} : vector<8x32xf32>, vector<32x256xf32>, vector<8x256xf32> -> vector<8x256xf32>
    %c11_102 = arith.constant 11 : index
    %c0_103 = arith.constant 0 : index
    %c0_104 = arith.constant 0 : index
    %163 = vector.load %arg2[%c11_102, %c0_103, %c0_104] : memref<12x32x256xf32, #tpu.memory_space<vmem>>, vector<1x32x256xf32>
    %164 = vector.shape_cast %163 : vector<1x32x256xf32> to vector<32x256xf32>
    %165 = vector.extract_strided_slice %164 {offsets = [0, 0], sizes = [8, 256], strides = [1, 1]} : vector<32x256xf32> to vector<8x256xf32>
    %166 = arith.addf %162, %165 : vector<8x256xf32>
    %c1_105 = arith.constant 1 : index
    %c0_106 = arith.constant 0 : index
    %c0_107 = arith.constant 0 : index
    %167 = vector.load %arg1[%c1_105, %c0_106, %c0_107] : memref<2x8x256xf32, #tpu.memory_space<vmem>>, vector<1x8x256xf32>
    %168 = vector.shape_cast %167 : vector<1x8x256xf32> to vector<8x256xf32>
    %169 = arith.addf %166, %168 : vector<8x256xf32>
    %c1_108 = arith.constant 1 : index
    %c0_109 = arith.constant 0 : index
    %c0_110 = arith.constant 0 : index
    %170 = vector.load %arg8[%c1_108, %c0_109, %c0_110] : memref<2x8x256xf32, #tpu.memory_space<vmem>>, vector<1x8x256xf32>
    %171 = vector.shape_cast %170 : vector<1x8x256xf32> to vector<8x256xf32>
    %172 = vector.shape_cast %169 : vector<8x256xf32> to vector<1x8x256xf32>
    tpu.vector_store %arg8[%c1_108, %c0_109, %c0_110], %172 {strides = array<i32>} : memref<2x8x256xf32, #tpu.memory_space<vmem>>, vector<1x8x256xf32>,
    return
  }
  func.func @transform_0(%arg0: i32) -> (i32, i32, i32) {
    %c0_i32 = arith.constant 0 : i32
    %c0_i32_0 = arith.constant 0 : i32
    %c0_i32_1 = arith.constant 0 : i32
    return %arg0, %c0_i32, %c0_i32_0 : i32, i32, i32
  }
  func.func @transform_1(%arg0: i32) -> (i32, i32, i32) {
    %c0_i32 = arith.constant 0 : i32
    %c0_i32_0 = arith.constant 0 : i32
    %c0_i32_1 = arith.constant 0 : i32
    %c0_i32_2 = arith.constant 0 : i32
    return %c0_i32, %c0_i32_0, %c0_i32_1 : i32, i32, i32
  }
  func.func @transform_2(%arg0: i32) -> (i32, i32) {
    %c0_i32 = arith.constant 0 : i32
    %c0_i32_0 = arith.constant 0 : i32
    %c0_i32_1 = arith.constant 0 : i32
    return %c0_i32, %c0_i32_0 : i32, i32
  }
  func.func @transform_3(%arg0: i32) -> (i32, i32) {
    %c0_i32 = arith.constant 0 : i32
    %c0_i32_0 = arith.constant 0 : i32
    %c0_i32_1 = arith.constant 0 : i32
    return %c0_i32, %c0_i32_0 : i32, i32
  }
  func.func @transform_4(%arg0: i32) -> (i32, i32) {
    %c0_i32 = arith.constant 0 : i32
    %c0_i32_0 = arith.constant 0 : i32
    %c0_i32_1 = arith.constant 0 : i32
    return %c0_i32, %c0_i32_0 : i32, i32
  }
  func.func @transform_5(%arg0: i32) -> (i32, i32) {
    %c0_i32 = arith.constant 0 : i32
    %c0_i32_0 = arith.constant 0 : i32
    %c0_i32_1 = arith.constant 0 : i32
    return %c0_i32, %c0_i32_0 : i32, i32
  }
  func.func @transform_6(%arg0: i32) -> (i32, i32) {
    %c0_i32 = arith.constant 0 : i32
    %c0_i32_0 = arith.constant 0 : i32
    %c0_i32_1 = arith.constant 0 : i32
    return %c0_i32, %c0_i32_0 : i32, i32
  }
  func.func @transform_7(%arg0: i32) -> (i32, i32, i32) {
    %c0_i32 = arith.constant 0 : i32
    %c0_i32_0 = arith.constant 0 : i32
    %c0_i32_1 = arith.constant 0 : i32
    return %arg0, %c0_i32, %c0_i32_0 : i32, i32, i32
  }
}

</mosaic_0001>

<llo_original>
// kernel: mbconv_forward.1
$region0: #{mbconv_forward.1}
  #allocation0 [shape = 'u32[]', space=smem, size = 0x4, offset = 0x4, fixed_abs, tag = 'smem constant byte address 0x4 - core index']
  #allocation1 [shape = 'u32[72,128]{1,0:T(1,128)}', space=vmem, size = 0x9000, scoped, tag = 'internal scratch']
  %s0 = inlined_call_operand.vmem [shape: f32[2,8,256], index: 0, kind: input, shape index: {}]
  %s1 = inlined_call_operand.hbm [shape: f32[12,32,256], index: 1, kind: input, shape index: {}]
  %s2 = inlined_call_operand.vmem [shape: f32[32,8], index: 2, kind: input, shape index: {}]
  %s3 = inlined_call_operand.vmem [shape: f32[8,32], index: 3, kind: input, shape index: {}]
  %s4 = inlined_call_operand.vmem [shape: f32[32,8], index: 4, kind: input, shape index: {}]
  %s5 = inlined_call_operand.vmem [shape: f32[8,32], index: 5, kind: input, shape index: {}]
  %s6 = inlined_call_operand.vmem [shape: f32[32,2], index: 6, kind: input, shape index: {}]
  %s7 = inlined_call_operand.vmem [shape: f32[2,8,256], index: 7, kind: output, shape index: {}]
  %s8 = sld [smem:[#allocation0]]
  $region42: #{mbconv_forward.1} parent=0
    _
  %s10 = ssub.s32 1, %s8
  %s11 = scalar_select 0, %s10, %s8
  $region1: #{mbconv_forward.1} parent=0
    #allocation2 [shape = 'u8[393216]{0}', space=vmem, size = 0x60000, scoped, tag = 'input window, operand 1, single buffered']
    #allocation3 [shape = 's32[1]{0}', space=sflag, size = 0x4, scoped, tag = 'scoped memory for mbconv_forward.1']
    %12 = vsyncpa [#allocation3], 0
    // Predicated region
    $region2: #{mbconv_forward.1} parent=1 // pred_check
      _
    $region3: #{mbconv_forward.1} parent=1 // pred_check_branch
      %14 = sbr.rel (0) target = $region5
    $region4: #{mbconv_forward.1} parent=1 // pred_region
      _
    $region5: #{mbconv_forward.1} parent=1 // pred_fallthru
      _
    // Predicated region
    $region6: #{mbconv_forward.1} parent=1 // pred_check
      _
    $region7: #{mbconv_forward.1} parent=1 // pred_check_branch
      %16 = sbr.rel (0) target = $region9
    $region8: #{mbconv_forward.1} parent=1 // pred_region
      %18 = vsyncadd [#allocation3], 0
      %s19 = sshll.u32 %s1, 4
      %s20 = int_to_ptr.hbm [resolvable:$true] %s19
      %s21 = sshll.u32 [#allocation2], 4
      %s22 = int_to_ptr.vmem [resolvable:$true] %s21
      %27 = dma.hbm_to_vmem [thread:$0]  %s20, 12288, %s22, [#allocation3], 256, 256, 16
    $region9: #{mbconv_forward.1} parent=1 // pred_fallthru
      _
    // Predicated region
    $region10: #{mbconv_forward.1} parent=1 // pred_check
      _
    $region11: #{mbconv_forward.1} parent=1 // pred_check_branch
      %29 = sbr.rel (0) target = $region13
    $region12: #{mbconv_forward.1} parent=1 // pred_region
      _
    $region13: #{mbconv_forward.1} parent=1 // pred_fallthru
      _
    // Predicated region
    $region14: #{mbconv_forward.1} parent=1 // pred_check
      _
    $region15: #{mbconv_forward.1} parent=1 // pred_check_branch
      %31 = sbr.rel (0) target = $region17
    $region16: #{mbconv_forward.1} parent=1 // pred_region
      _
    $region17: #{mbconv_forward.1} parent=1 // pred_fallthru
      _
    // Predicated region
    $region18: #{mbconv_forward.1} parent=1 // pred_check
      _
    $region19: #{mbconv_forward.1} parent=1 // pred_check_branch
      %33 = sbr.rel (0) target = $region21
    $region20: #{mbconv_forward.1} parent=1 // pred_region
      _
    $region21: #{mbconv_forward.1} parent=1 // pred_fallthru
      _
    // Predicated region
    $region22: #{mbconv_forward.1} parent=1 // pred_check
      _
    $region23: #{mbconv_forward.1} parent=1 // pred_check_branch
      %35 = sbr.rel (0) target = $region25
    $region24: #{mbconv_forward.1} parent=1 // pred_region
      _
    $region25: #{mbconv_forward.1} parent=1 // pred_fallthru
      _
    // Predicated region
    $region26: #{mbconv_forward.1} parent=1 // pred_check
      _
    $region27: #{mbconv_forward.1} parent=1 // pred_check_branch
      %37 = sbr.rel (0) target = $region29
    $region28: #{mbconv_forward.1} parent=1 // pred_region
      _
    $region29: #{mbconv_forward.1} parent=1 // pred_fallthru
      _
    // Predicated region
    $region30: #{mbconv_forward.1} parent=1 // pred_check
      _
    $region31: #{mbconv_forward.1} parent=1 // pred_check_branch
      %39 = sbr.rel (0) target = $region33
    $region32: #{mbconv_forward.1} parent=1 // pred_region
      %41 = dma.done [#allocation3], 12288
    $region33: #{mbconv_forward.1} parent=1 // pred_fallthru
      _
    %v42 = vld [vmem:[%s2] sm:$0xff]
    %v43 = vld [vmem:[%s2 + $0x8] sm:$0xff]
    %v44 = vld [vmem:[%s2 + $0x10] sm:$0xff]
    %v45 = vld [vmem:[%s2 + $0x18] sm:$0xff]
    %v46 = vld [vmem:[%s6] sm:$0xff]
    %v47 = vld [vmem:[%s6 + $0x8] sm:$0xff]
    %v48 = vld [vmem:[%s6 + $0x10] sm:$0xff]
    %v49 = vld [vmem:[%s6 + $0x18] sm:$0xff]
    %v50 = vld [vmem:[%s0] sm:$0xff]
    %v51 = vld [vmem:[%s0 + $0x8] sm:$0xff]
    %s52 = scalar_lea.vmem [#allocation2], 576
    %v53 = vld [vmem:[%s52] sm:$0xff]
    %v54 = vld [vmem:[%s52 + $0x8] sm:$0xff]
    %v55 = vld [vmem:[%s52 + $0x10] sm:$0xff]
    %v56 = vld [vmem:[%s52 + $0x18] sm:$0xff]
    %v57 = vld [vmem:[%s52 + $0x20] sm:$0xff]
    %v58 = vld [vmem:[%s52 + $0x28] sm:$0xff]
    %v59 = vld [vmem:[%s52 + $0x30] sm:$0xff]
    %v60 = vld [vmem:[%s52 + $0x38] sm:$0xff]
    %vm61 = vcmask 64512
    %v63 = vsel %vm61, %v42, 0
    %v66 = vsel %vm61, %v43, 0
    %v69 = vsel %vm61, %v44, 0
    %v72 = vsel %vm61, %v45, 0
    %74 = vmatpush.msra.mxu0 0.0
    %75 = vmatpush.msra.mxu0 0.0
    %76 = vmatpush.msra.mxu0 0.0
    %77 = vmatpush.msra.mxu0 0.0
    %78 = vmatpush.msra.mxu0 0.0
    %79 = vmatpush.msra.mxu0 0.0
    %80 = vmatpush.msra.mxu0 0.0
    %81 = vmatpush.msra.mxu0 0.0
    %82 = vmatpush.msra.mxu0 0.0
    %83 = vmatpush.msra.mxu0 0.0
    %84 = vmatpush.msra.mxu0 0.0
    %85 = vmatpush.msra.mxu0 0.0
    %86 = vmatpush.msra.mxu0 0.0
    %87 = vmatpush.msra.mxu0 0.0
    %88 = vmatpush.msra.mxu0 0.0
    %89 = vmatpush.msra.mxu0 %v50
    %90 = vmatmul.f32.gmra.mxu0 %v63
    %v91 = vpop.f32.mrf.mxu0
    %v92 = vadd.f32 %v53, %v91
    %93 = vmatmul.f32.gmra.mxu0 %v66
    %v94 = vpop.f32.mrf.mxu0
    %v95 = vadd.f32 %v55, %v94
    %96 = vmatmul.f32.gmra.mxu0 %v69
    %v97 = vpop.f32.mrf.mxu0
    %v98 = vadd.f32 %v57, %v97
    %99 = vmatmul.f32.gmra.mxu0 %v72
    %v100 = vpop.f32.mrf.mxu0
    %v101 = vadd.f32 %v59, %v100
    %102 = vdwg.mxu0
    %103 = vmatpush.msra.mxu0 0.0
    %104 = vmatpush.msra.mxu0 0.0
    %105 = vmatpush.msra.mxu0 0.0
    %106 = vmatpush.msra.mxu0 0.0
    %107 = vmatpush.msra.mxu0 0.0
    %108 = vmatpush.msra.mxu0 0.0
    %109 = vmatpush.msra.mxu0 0.0
    %110 = vmatpush.msra.mxu0 0.0
    %111 = vmatpush.msra.mxu0 0.0
    %112 = vmatpush.msra.mxu0 0.0
    %113 = vmatpush.msra.mxu0 0.0
    %114 = vmatpush.msra.mxu0 0.0
    %115 = vmatpush.msra.mxu0 0.0
    %116 = vmatpush.msra.mxu0 0.0
    %117 = vmatpush.msra.mxu0 0.0
    %118 = vmatpush.msra.mxu0 %v51
    %119 = vmatmul.f32.gmra.mxu0 %v63
    %v120 = vpop.f32.mrf.mxu0
    %v121 = vadd.f32 %v54, %v120
    %122 = vmatmul.f32.gmra.mxu0 %v66
    %v123 = vpop.f32.mrf.mxu0
    %v124 = vadd.f32 %v56, %v123
    %125 = vmatmul.f32.gmra.mxu0 %v69
    %v126 = vpop.f32.mrf.mxu0
    %v127 = vadd.f32 %v58, %v126
    %128 = vmatmul.f32.gmra.mxu0 %v72
    %v129 = vpop.f32.mrf.mxu0
    %v130 = vadd.f32 %v60, %v129
    %131 = vdwg.mxu0
    %v132 = vmax.f32 %v92, 0.0
    %v133 = vmax.f32 %v121, 0.0
    %v134 = vmax.f32 %v95, 0.0
    %v135 = vmax.f32 %v124, 0.0
    %v136 = vmax.f32 %v98, 0.0
    %v137 = vmax.f32 %v127, 0.0
    %v138 = vmax.f32 %v101, 0.0
    %v139 = vmax.f32 %v130, 0.0
    %s140 = scalar_lea.vmem [#allocation2], 256
    %v141 = vld [vmem:[%s140] sm:$0xff]
    %v142 = vld [vmem:[%s140 + $0x8] sm:$0xff]
    %v143 = vld [vmem:[%s140 + $0x10] sm:$0xff]
    %v144 = vld [vmem:[%s140 + $0x18] sm:$0xff]
    %v145 = vld [vmem:[%s140 + $0x20] sm:$0xff]
    %v146 = vld [vmem:[%s140 + $0x28] sm:$0xff]
    %v147 = vld [vmem:[%s140 + $0x30] sm:$0xff]
    %v148 = vld [vmem:[%s140 + $0x38] sm:$0xff]
    %v149 = vmul.f32 %v132, %v141
    %v150 = vmul.f32 %v133, %v142
    %v151 = vmul.f32 %v134, %v143
    %v152 = vmul.f32 %v135, %v144
    %v153 = vmul.f32 %v136, %v145
    %v154 = vmul.f32 %v137, %v146
    %v155 = vmul.f32 %v138, %v147
    %v156 = vmul.f32 %v139, %v148
    %157 = vrot.lane.b32.xlu0 %v132, 17
    %v158 = vpop.permute.xlu0 %157
    %159 = vrot.lane.b32.xlu0 %v134, 17
    %v160 = vpop.permute.xlu0 %159
    %161 = vrot.lane.b32.xlu0 %v136, 17
    %v162 = vpop.permute.xlu0 %161
    %163 = vrot.lane.b32.xlu0 %v138, 17
    %v164 = vpop.permute.xlu0 %163
    %165 = vrot.lane.b32.xlu0 %v133, 17
    %v166 = vpop.permute.xlu0 %165
    %167 = vrot.lane.b32.xlu0 %v135, 17
    %v168 = vpop.permute.xlu0 %167
    %169 = vrot.lane.b32.xlu0 %v137, 17
    %v170 = vpop.permute.xlu0 %169
    %171 = vrot.lane.b32.xlu0 %v139, 17
    %v172 = vpop.permute.xlu0 %171
    %v173 = vlaneseq
    %v174 = vand.u32 %v173, 127
    %vm175 = vcmp.lt.s32.totalorder %v174, 17
    %v176 = vsel %vm175, %v158, %v166
    %v177 = vsel %vm175, %v160, %v168
    %v178 = vsel %vm175, %v162, %v170
    %v179 = vsel %vm175, %v164, %v172
    %v180 = vsel %vm175, %v166, %v158
    %v181 = vsel %vm175, %v168, %v160
    %v182 = vsel %vm175, %v170, %v162
    %v183 = vsel %vm175, %v172, %v164
    %v184 = vld [vmem:[#allocation2] sm:$0xff]
    %v185 = vld [vmem:[#allocation2 + $0x8] sm:$0xff]
    %v186 = vld [vmem:[#allocation2 + $0x10] sm:$0xff]
    %v187 = vld [vmem:[#allocation2 + $0x18] sm:$0xff]
    %v188 = vld [vmem:[#allocation2 + $0x20] sm:$0xff]
    %v189 = vld [vmem:[#allocation2 + $0x28] sm:$0xff]
    %v190 = vld [vmem:[#allocation2 + $0x30] sm:$0xff]
    %v191 = vld [vmem:[#allocation2 + $0x38] sm:$0xff]
    %v192 = vmul.f32 %v180, %v184
    %v193 = vmul.f32 %v176, %v185
    %v194 = vmul.f32 %v181, %v186
    %v195 = vmul.f32 %v177, %v187
    %v196 = vmul.f32 %v182, %v188
    %v197 = vmul.f32 %v178, %v189
    %v198 = vmul.f32 %v183, %v190
    %v199 = vmul.f32 %v179, %v191
    %v200 = vadd.f32 %v149, %v192
    %v201 = vadd.f32 %v150, %v193
    %v202 = vadd.f32 %v151, %v194
    %v203 = vadd.f32 %v152, %v195
    %v204 = vadd.f32 %v153, %v196
    %v205 = vadd.f32 %v154, %v197
    %v206 = vadd.f32 %v155, %v198
    %v207 = vadd.f32 %v156, %v199
    %208 = vrot.lane.b32.xlu0 %v132, 16
    %v209 = vpop.permute.xlu0 %208
    %210 = vrot.lane.b32.xlu0 %v134, 16
    %v211 = vpop.permute.xlu0 %210
    %212 = vrot.lane.b32.xlu0 %v136, 16
    %v213 = vpop.permute.xlu0 %212
    %214 = vrot.lane.b32.xlu0 %v138, 16
    %v215 = vpop.permute.xlu0 %214
    %216 = vrot.lane.b32.xlu0 %v133, 16
    %v217 = vpop.permute.xlu0 %216
    %218 = vrot.lane.b32.xlu0 %v135, 16
    %v219 = vpop.permute.xlu0 %218
    %220 = vrot.lane.b32.xlu0 %v137, 16
    %v221 = vpop.permute.xlu0 %220
    %222 = vrot.lane.b32.xlu0 %v139, 16
    %v223 = vpop.permute.xlu0 %222
    %vm224 = vcmp.lt.s32.totalorder %v174, 16
    %v225 = vsel %vm224, %v209, %v217
    %v226 = vsel %vm224, %v211, %v219
    %v227 = vsel %vm224, %v213, %v221
    %v228 = vsel %vm224, %v215, %v223
    %v229 = vsel %vm224, %v217, %v209
    %v230 = vsel %vm224, %v219, %v211
    %v231 = vsel %vm224, %v221, %v213
    %v232 = vsel %vm224, %v223, %v215
    %s233 = scalar_lea.vmem [#allocation2], 64
    %v234 = vld [vmem:[%s233] sm:$0xff]
    %v235 = vld [vmem:[%s233 + $0x8] sm:$0xff]
    %v236 = vld [vmem:[%s233 + $0x10] sm:$0xff]
    %v237 = vld [vmem:[%s233 + $0x18] sm:$0xff]
    %v238 = vld [vmem:[%s233 + $0x20] sm:$0xff]
    %v239 = vld [vmem:[%s233 + $0x28] sm:$0xff]
    %v240 = vld [vmem:[%s233 + $0x30] sm:$0xff]
    %v241 = vld [vmem:[%s233 + $0x38] sm:$0xff]
    %v242 = vmul.f32 %v229, %v234
    %v243 = vmul.f32 %v225, %v235
    %v244 = vmul.f32 %v230, %v236
    %v245 = vmul.f32 %v226, %v237
    %v246 = vmul.f32 %v231, %v238
    %v247 = vmul.f32 %v227, %v239
    %v248 = vmul.f32 %v232, %v240
    %v249 = vmul.f32 %v228, %v241
    %v250 = vadd.f32 %v200, %v242
    %v251 = vadd.f32 %v201, %v243
    %v252 = vadd.f32 %v202, %v244
    %v253 = vadd.f32 %v203, %v245
    %v254 = vadd.f32 %v204, %v246
    %v255 = vadd.f32 %v205, %v247
    %v256 = vadd.f32 %v206, %v248
    %v257 = vadd.f32 %v207, %v249
    %258 = vrot.lane.b32.xlu0 %v132, 15
    %v259 = vpop.permute.xlu0 %258
    %260 = vrot.lane.b32.xlu0 %v134, 15
    %v261 = vpop.permute.xlu0 %260
    %262 = vrot.lane.b32.xlu0 %v136, 15
    %v263 = vpop.permute.xlu0 %262
    %264 = vrot.lane.b32.xlu0 %v138, 15
    %v265 = vpop.permute.xlu0 %264
    %266 = vrot.lane.b32.xlu0 %v133, 15
    %v267 = vpop.permute.xlu0 %266
    %268 = vrot.lane.b32.xlu0 %v135, 15
    %v269 = vpop.permute.xlu0 %268
    %270 = vrot.lane.b32.xlu0 %v137, 15
    %v271 = vpop.permute.xlu0 %270
    %272 = vrot.lane.b32.xlu0 %v139, 15
    %v273 = vpop.permute.xlu0 %272
    %vm274 = vcmp.lt.s32.totalorder %v174, 15
    %v275 = vsel %vm274, %v259, %v267
    %v276 = vsel %vm274, %v261, %v269
    %v277 = vsel %vm274, %v263, %v271
    %v278 = vsel %vm274, %v265, %v273
    %v279 = vsel %vm274, %v267, %v259
    %v280 = vsel %vm274, %v269, %v261
    %v281 = vsel %vm274, %v271, %v263
    %v282 = vsel %vm274, %v273, %v265
    %s283 = scalar_lea.vmem [#allocation2], 128
    %v284 = vld [vmem:[%s283] sm:$0xff]
    %v285 = vld [vmem:[%s283 + $0x8] sm:$0xff]
    %v286 = vld [vmem:[%s283 + $0x10] sm:$0xff]
    %v287 = vld [vmem:[%s283 + $0x18] sm:$0xff]
    %v288 = vld [vmem:[%s283 + $0x20] sm:$0xff]
    %v289 = vld [vmem:[%s283 + $0x28] sm:$0xff]
    %v290 = vld [vmem:[%s283 + $0x30] sm:$0xff]
    %v291 = vld [vmem:[%s283 + $0x38] sm:$0xff]
    %v292 = vmul.f32 %v279, %v284
    %v293 = vmul.f32 %v275, %v285
    %v294 = vmul.f32 %v280, %v286
    %v295 = vmul.f32 %v276, %v287
    %v296 = vmul.f32 %v281, %v288
    %v297 = vmul.f32 %v277, %v289
    %v298 = vmul.f32 %v282, %v290
    %v299 = vmul.f32 %v278, %v291
    %v300 = vadd.f32 %v250, %v292
    %v301 = vadd.f32 %v251, %v293
    %v302 = vadd.f32 %v252, %v294
    %v303 = vadd.f32 %v253, %v295
    %v304 = vadd.f32 %v254, %v296
    %v305 = vadd.f32 %v255, %v297
    %v306 = vadd.f32 %v256, %v298
    %v307 = vadd.f32 %v257, %v299
    %308 = vrot.lane.b32.xlu0 %v132, 1
    %v309 = vpop.permute.xlu0 %308
    %310 = vrot.lane.b32.xlu0 %v134, 1
    %v311 = vpop.permute.xlu0 %310
    %312 = vrot.lane.b32.xlu0 %v136, 1
    %v313 = vpop.permute.xlu0 %312
    %314 = vrot.lane.b32.xlu0 %v138, 1
    %v315 = vpop.permute.xlu0 %314
    %316 = vrot.lane.b32.xlu0 %v133, 1
    %v317 = vpop.permute.xlu0 %316
    %318 = vrot.lane.b32.xlu0 %v135, 1
    %v319 = vpop.permute.xlu0 %318
    %320 = vrot.lane.b32.xlu0 %v137, 1
    %v321 = vpop.permute.xlu0 %320
    %322 = vrot.lane.b32.xlu0 %v139, 1
    %v323 = vpop.permute.xlu0 %322
    %vm324 = vcmp.lt.s32.totalorder %v174, 1
    %v325 = vsel %vm324, %v309, %v317
    %v326 = vsel %vm324, %v311, %v319
    %v327 = vsel %vm324, %v313, %v321
    %v328 = vsel %vm324, %v315, %v323
    %v329 = vsel %vm324, %v317, %v309
    %v330 = vsel %vm324, %v319, %v311
    %v331 = vsel %vm324, %v321, %v313
    %v332 = vsel %vm324, %v323, %v315
    %s333 = scalar_lea.vmem [#allocation2], 192
    %v334 = vld [vmem:[%s333] sm:$0xff]
    %v335 = vld [vmem:[%s333 + $0x8] sm:$0xff]
    %v336 = vld [vmem:[%s333 + $0x10] sm:$0xff]
    %v337 = vld [vmem:[%s333 + $0x18] sm:$0xff]
    %v338 = vld [vmem:[%s333 + $0x20] sm:$0xff]
    %v339 = vld [vmem:[%s333 + $0x28] sm:$0xff]
    %v340 = vld [vmem:[%s333 + $0x30] sm:$0xff]
    %v341 = vld [vmem:[%s333 + $0x38] sm:$0xff]
    %v342 = vmul.f32 %v329, %v334
    %v343 = vmul.f32 %v325, %v335
    %v344 = vmul.f32 %v330, %v336
    %v345 = vmul.f32 %v326, %v337
    %v346 = vmul.f32 %v331, %v338
    %v347 = vmul.f32 %v327, %v339
    %v348 = vmul.f32 %v332, %v340
    %v349 = vmul.f32 %v328, %v341
    %v350 = vadd.f32 %v300, %v342
    %v351 = vadd.f32 %v301, %v343
    %v352 = vadd.f32 %v302, %v344
    %v353 = vadd.f32 %v303, %v345
    %v354 = vadd.f32 %v304, %v346
    %v355 = vadd.f32 %v305, %v347
    %v356 = vadd.f32 %v306, %v348
    %v357 = vadd.f32 %v307, %v349
    %358 = vrot.lane.b32.xlu0 %v132, 127
    %v359 = vpop.permute.xlu0 %358
    %360 = vrot.lane.b32.xlu0 %v134, 127
    %v361 = vpop.permute.xlu0 %360
    %362 = vrot.lane.b32.xlu0 %v136, 127
    %v363 = vpop.permute.xlu0 %362
    %364 = vrot.lane.b32.xlu0 %v138, 127
    %v365 = vpop.permute.xlu0 %364
    %366 = vrot.lane.b32.xlu0 %v133, 127
    %v367 = vpop.permute.xlu0 %366
    %368 = vrot.lane.b32.xlu0 %v135, 127
    %v369 = vpop.permute.xlu0 %368
    %370 = vrot.lane.b32.xlu0 %v137, 127
    %v371 = vpop.permute.xlu0 %370
    %372 = vrot.lane.b32.xlu0 %v139, 127
    %v373 = vpop.permute.xlu0 %372
    %vm374 = vcmp.lt.s32.totalorder %v174, 127
    %v375 = vsel %vm374, %v359, %v367
    %v376 = vsel %vm374, %v361, %v369
    %v377 = vsel %vm374, %v363, %v371
    %v378 = vsel %vm374, %v365, %v373
    %v379 = vsel %vm374, %v367, %v359
    %v380 = vsel %vm374, %v369, %v361
    %v381 = vsel %vm374, %v371, %v363
    %v382 = vsel %vm374, %v373, %v365
    %s383 = scalar_lea.vmem [#allocation2], 320
    %v384 = vld [vmem:[%s383] sm:$0xff]
    %v385 = vld [vmem:[%s383 + $0x8] sm:$0xff]
    %v386 = vld [vmem:[%s383 + $0x10] sm:$0xff]
    %v387 = vld [vmem:[%s383 + $0x18] sm:$0xff]
    %v388 = vld [vmem:[%s383 + $0x20] sm:$0xff]
    %v389 = vld [vmem:[%s383 + $0x28] sm:$0xff]
    %v390 = vld [vmem:[%s383 + $0x30] sm:$0xff]
    %v391 = vld [vmem:[%s383 + $0x38] sm:$0xff]
    %v392 = vmul.f32 %v375, %v384
    %v393 = vmul.f32 %v379, %v385
    %v394 = vmul.f32 %v376, %v386
    %v395 = vmul.f32 %v380, %v387
    %v396 = vmul.f32 %v377, %v388
    %v397 = vmul.f32 %v381, %v389
    %v398 = vmul.f32 %v378, %v390
    %v399 = vmul.f32 %v382, %v391
    %v400 = vadd.f32 %v350, %v392
    %v401 = vadd.f32 %v351, %v393
    %v402 = vadd.f32 %v352, %v394
    %v403 = vadd.f32 %v353, %v395
    %v404 = vadd.f32 %v354, %v396
    %v405 = vadd.f32 %v355, %v397
    %v406 = vadd.f32 %v356, %v398
    %v407 = vadd.f32 %v357, %v399
    %408 = vrot.lane.b32.xlu0 %v132, 113
    %v409 = vpop.permute.xlu0 %408
    %410 = vrot.lane.b32.xlu0 %v134, 113
    %v411 = vpop.permute.xlu0 %410
    %412 = vrot.lane.b32.xlu0 %v136, 113
    %v413 = vpop.permute.xlu0 %412
    %414 = vrot.lane.b32.xlu0 %v138, 113
    %v415 = vpop.permute.xlu0 %414
    %416 = vrot.lane.b32.xlu0 %v133, 113
    %v417 = vpop.permute.xlu0 %416
    %418 = vrot.lane.b32.xlu0 %v135, 113
    %v419 = vpop.permute.xlu0 %418
    %420 = vrot.lane.b32.xlu0 %v137, 113
    %v421 = vpop.permute.xlu0 %420
    %422 = vrot.lane.b32.xlu0 %v139, 113
    %v423 = vpop.permute.xlu0 %422
    %vm424 = vcmp.lt.s32.totalorder %v174, 113
    %v425 = vsel %vm424, %v409, %v417
    %v426 = vsel %vm424, %v411, %v419
    %v427 = vsel %vm424, %v413, %v421
    %v428 = vsel %vm424, %v415, %v423
    %v429 = vsel %vm424, %v417, %v409
    %v430 = vsel %vm424, %v419, %v411
    %v431 = vsel %vm424, %v421, %v413
    %v432 = vsel %vm424, %v423, %v415
    %s433 = scalar_lea.vmem [#allocation2], 384
    %v434 = vld [vmem:[%s433] sm:$0xff]
    %v435 = vld [vmem:[%s433 + $0x8] sm:$0xff]
    %v436 = vld [vmem:[%s433 + $0x10] sm:$0xff]
    %v437 = vld [vmem:[%s433 + $0x18] sm:$0xff]
    %v438 = vld [vmem:[%s433 + $0x20] sm:$0xff]
    %v439 = vld [vmem:[%s433 + $0x28] sm:$0xff]
    %v440 = vld [vmem:[%s433 + $0x30] sm:$0xff]
    %v441 = vld [vmem:[%s433 + $0x38] sm:$0xff]
    %v442 = vmul.f32 %v425, %v434
    %v443 = vmul.f32 %v429, %v435
    %v444 = vmul.f32 %v426, %v436
    %v445 = vmul.f32 %v430, %v437
    %v446 = vmul.f32 %v427, %v438
    %v447 = vmul.f32 %v431, %v439
    %v448 = vmul.f32 %v428, %v440
    %v449 = vmul.f32 %v432, %v441
    %v450 = vadd.f32 %v400, %v442
    %v451 = vadd.f32 %v401, %v443
    %v452 = vadd.f32 %v402, %v444
    %v453 = vadd.f32 %v403, %v445
    %v454 = vadd.f32 %v404, %v446
    %v455 = vadd.f32 %v405, %v447
    %v456 = vadd.f32 %v406, %v448
    %v457 = vadd.f32 %v407, %v449
    %458 = vrot.lane.b32.xlu0 %v132, 112
    %v459 = vpop.permute.xlu0 %458
    %460 = vrot.lane.b32.xlu0 %v134, 112
    %v461 = vpop.permute.xlu0 %460
    %462 = vrot.lane.b32.xlu0 %v136, 112
    %v463 = vpop.permute.xlu0 %462
    %464 = vrot.lane.b32.xlu0 %v138, 112
    %v465 = vpop.permute.xlu0 %464
    %466 = vrot.lane.b32.xlu0 %v133, 112
    %v467 = vpop.permute.xlu0 %466
    %468 = vrot.lane.b32.xlu0 %v135, 112
    %v469 = vpop.permute.xlu0 %468
    %470 = vrot.lane.b32.xlu0 %v137, 112
    %v471 = vpop.permute.xlu0 %470
    %472 = vrot.lane.b32.xlu0 %v139, 112
    %v473 = vpop.permute.xlu0 %472
    %vm474 = vcmp.lt.s32.totalorder %v174, 112
    %v475 = vsel %vm474, %v459, %v467
    %v476 = vsel %vm474, %v461, %v469
    %v477 = vsel %vm474, %v463, %v471
    %v478 = vsel %vm474, %v465, %v473
    %v479 = vsel %vm474, %v467, %v459
    %v480 = vsel %vm474, %v469, %v461
    %v481 = vsel %vm474, %v471, %v463
    %v482 = vsel %vm474, %v473, %v465
    %s483 = scalar_lea.vmem [#allocation2], 448
    %v484 = vld [vmem:[%s483] sm:$0xff]
    %v485 = vld [vmem:[%s483 + $0x8] sm:$0xff]
    %v486 = vld [vmem:[%s483 + $0x10] sm:$0xff]
    %v487 = vld [vmem:[%s483 + $0x18] sm:$0xff]
    %v488 = vld [vmem:[%s483 + $0x20] sm:$0xff]
    %v489 = vld [vmem:[%s483 + $0x28] sm:$0xff]
    %v490 = vld [vmem:[%s483 + $0x30] sm:$0xff]
    %v491 = vld [vmem:[%s483 + $0x38] sm:$0xff]
    %v492 = vmul.f32 %v475, %v484
    %v493 = vmul.f32 %v479, %v485
    %v494 = vmul.f32 %v476, %v486
    %v495 = vmul.f32 %v480, %v487
    %v496 = vmul.f32 %v477, %v488
    %v497 = vmul.f32 %v481, %v489
    %v498 = vmul.f32 %v478, %v490
    %v499 = vmul.f32 %v482, %v491
    %v500 = vadd.f32 %v450, %v492
    %v501 = vadd.f32 %v451, %v493
    %v502 = vadd.f32 %v452, %v494
    %v503 = vadd.f32 %v453, %v495
    %v504 = vadd.f32 %v454, %v496
    %v505 = vadd.f32 %v455, %v497
    %v506 = vadd.f32 %v456, %v498
    %v507 = vadd.f32 %v457, %v499
    %508 = vrot.lane.b32.xlu0 %v132, 111
    %v509 = vpop.permute.xlu0 %508
    %510 = vrot.lane.b32.xlu0 %v134, 111
    %v511 = vpop.permute.xlu0 %510
    %512 = vrot.lane.b32.xlu0 %v136, 111
    %v513 = vpop.permute.xlu0 %512
    %514 = vrot.lane.b32.xlu0 %v138, 111
    %v515 = vpop.permute.xlu0 %514
    %516 = vrot.lane.b32.xlu0 %v133, 111
    %v517 = vpop.permute.xlu0 %516
    %518 = vrot.lane.b32.xlu0 %v135, 111
    %v519 = vpop.permute.xlu0 %518
    %520 = vrot.lane.b32.xlu0 %v137, 111
    %v521 = vpop.permute.xlu0 %520
    %522 = vrot.lane.b32.xlu0 %v139, 111
    %v523 = vpop.permute.xlu0 %522
    %vm524 = vcmp.lt.s32.totalorder %v174, 111
    %v525 = vsel %vm524, %v509, %v517
    %v526 = vsel %vm524, %v511, %v519
    %v527 = vsel %vm524, %v513, %v521
    %v528 = vsel %vm524, %v515, %v523
    %v529 = vsel %vm524, %v517, %v509
    %v530 = vsel %vm524, %v519, %v511
    %v531 = vsel %vm524, %v521, %v513
    %v532 = vsel %vm524, %v523, %v515
    %s533 = scalar_lea.vmem [#allocation2], 512
    %v534 = vld [vmem:[%s533] sm:$0xff]
    %v535 = vld [vmem:[%s533 + $0x8] sm:$0xff]
    %v536 = vld [vmem:[%s533 + $0x10] sm:$0xff]
    %v537 = vld [vmem:[%s533 + $0x18] sm:$0xff]
    %v538 = vld [vmem:[%s533 + $0x20] sm:$0xff]
    %v539 = vld [vmem:[%s533 + $0x28] sm:$0xff]
    %v540 = vld [vmem:[%s533 + $0x30] sm:$0xff]
    %v541 = vld [vmem:[%s533 + $0x38] sm:$0xff]
    %v542 = vmul.f32 %v525, %v534
    %v543 = vmul.f32 %v529, %v535
    %v544 = vmul.f32 %v526, %v536
    %v545 = vmul.f32 %v530, %v537
    %v546 = vmul.f32 %v527, %v538
    %v547 = vmul.f32 %v531, %v539
    %v548 = vmul.f32 %v528, %v540
    %v549 = vmul.f32 %v532, %v541
    %v550 = vadd.f32 %v500, %v542
    %v551 = vadd.f32 %v501, %v543
    %v552 = vadd.f32 %v502, %v544
    %v553 = vadd.f32 %v503, %v545
    %v554 = vadd.f32 %v504, %v546
    %v555 = vadd.f32 %v505, %v547
    %v556 = vadd.f32 %v506, %v548
    %v557 = vadd.f32 %v507, %v549
    %s558 = scalar_lea.vmem [#allocation2], 640
    %v559 = vld [vmem:[%s558] sm:$0xff]
    %v560 = vld [vmem:[%s558 + $0x8] sm:$0xff]
    %v561 = vld [vmem:[%s558 + $0x10] sm:$0xff]
    %v562 = vld [vmem:[%s558 + $0x18] sm:$0xff]
    %v563 = vld [vmem:[%s558 + $0x20] sm:$0xff]
    %v564 = vld [vmem:[%s558 + $0x28] sm:$0xff]
    %v565 = vld [vmem:[%s558 + $0x30] sm:$0xff]
    %v566 = vld [vmem:[%s558 + $0x38] sm:$0xff]
    %v567 = vadd.f32 %v550, %v559
    %v568 = vadd.f32 %v551, %v560
    %v569 = vadd.f32 %v552, %v561
    %v570 = vadd.f32 %v553, %v562
    %v571 = vadd.f32 %v554, %v563
    %v572 = vadd.f32 %v555, %v564
    %v573 = vadd.f32 %v556, %v565
    %v574 = vadd.f32 %v557, %v566
    %v575 = vmax.f32 %v567, 0.0
    %v576 = vmax.f32 %v568, 0.0
    %v577 = vmax.f32 %v569, 0.0
    %v578 = vmax.f32 %v570, 0.0
    %v579 = vmax.f32 %v571, 0.0
    %v580 = vmax.f32 %v572, 0.0
    %v581 = vmax.f32 %v573, 0.0
    %v582 = vmax.f32 %v574, 0.0
    %v583 = vadd.f32 %v575, %v576
    %584 = vadd.xlane.f32.xlu0 %v583
    %v585 = vpop.xlane.xlu0 %584
    %v586 = vadd.f32 %v577, %v578
    %587 = vadd.xlane.f32.xlu0 %v586
    %v588 = vpop.xlane.xlu0 %587
    %v589 = vadd.f32 %v579, %v580
    %590 = vadd.xlane.f32.xlu0 %v589
    %v591 = vpop.xlane.xlu0 %590
    %v592 = vadd.f32 %v581, %v582
    %593 = vadd.xlane.f32.xlu0 %v592
    %v594 = vpop.xlane.xlu0 %593
    %v595 = vmul.f32 %v585, 0.00390625
    %v596 = vmul.f32 %v588, 0.00390625
    %v597 = vmul.f32 %v591, 0.00390625
    %v598 = vmul.f32 %v594, 0.00390625
    %s599 = scalar_lea.vmem %s0, 16
    %v600 = vld [vmem:[%s599] sm:$0xff]
    %v601 = vld [vmem:[%s599 + $0x8] sm:$0xff]
    %602 = vmatpush.msra.mxu0 0.0
    %603 = vmatpush.msra.mxu0 0.0
    %604 = vmatpush.msra.mxu0 0.0
    %605 = vmatpush.msra.mxu0 0.0
    %606 = vmatpush.msra.mxu0 0.0
    %607 = vmatpush.msra.mxu0 0.0
    %608 = vmatpush.msra.mxu0 0.0
    %609 = vmatpush.msra.mxu0 0.0
    %610 = vmatpush.msra.mxu0 0.0
    %611 = vmatpush.msra.mxu0 0.0
    %612 = vmatpush.msra.mxu0 0.0
    %613 = vmatpush.msra.mxu0 0.0
    %614 = vmatpush.msra.mxu0 0.0
    %615 = vmatpush.msra.mxu0 0.0
    %616 = vmatpush.msra.mxu0 0.0
    %617 = vmatpush.msra.mxu0 %v600
    %618 = vmatmul.f32.gmra.mxu0 %v63
    %v619 = vpop.f32.mrf.mxu0
    %v620 = vadd.f32 %v53, %v619
    %621 = vmatmul.f32.gmra.mxu0 %v66
    %v622 = vpop.f32.mrf.mxu0
    %v623 = vadd.f32 %v55, %v622
    %624 = vmatmul.f32.gmra.mxu0 %v69
    %v625 = vpop.f32.mrf.mxu0
    %v626 = vadd.f32 %v57, %v625
    %627 = vmatmul.f32.gmra.mxu0 %v72
    %v628 = vpop.f32.mrf.mxu0
    %v629 = vadd.f32 %v59, %v628
    %630 = vdwg.mxu0
    %631 = vmatpush.msra.mxu0 0.0
    %632 = vmatpush.msra.mxu0 0.0
    %633 = vmatpush.msra.mxu0 0.0
    %634 = vmatpush.msra.mxu0 0.0
    %635 = vmatpush.msra.mxu0 0.0
    %636 = vmatpush.msra.mxu0 0.0
    %637 = vmatpush.msra.mxu0 0.0
    %638 = vmatpush.msra.mxu0 0.0
    %639 = vmatpush.msra.mxu0 0.0
    %640 = vmatpush.msra.mxu0 0.0
    %641 = vmatpush.msra.mxu0 0.0
    %642 = vmatpush.msra.mxu0 0.0
    %643 = vmatpush.msra.mxu0 0.0
    %644 = vmatpush.msra.mxu0 0.0
    %645 = vmatpush.msra.mxu0 0.0
    %646 = vmatpush.msra.mxu0 %v601
    %647 = vmatmul.f32.gmra.mxu0 %v63
    %v648 = vpop.f32.mrf.mxu0
    %v649 = vadd.f32 %v54, %v648
    %650 = vmatmul.f32.gmra.mxu0 %v66
    %v651 = vpop.f32.mrf.mxu0
    %v652 = vadd.f32 %v56, %v651
    %653 = vmatmul.f32.gmra.mxu0 %v69
    %v654 = vpop.f32.mrf.mxu0
    %v655 = vadd.f32 %v58, %v654
    %656 = vmatmul.f32.gmra.mxu0 %v72
    %v657 = vpop.f32.mrf.mxu0
    %v658 = vadd.f32 %v60, %v657
    %659 = vdwg.mxu0
    %v660 = vmax.f32 %v620, 0.0
    %v661 = vmax.f32 %v649, 0.0
    %v662 = vmax.f32 %v623, 0.0
    %v663 = vmax.f32 %v652, 0.0
    %v664 = vmax.f32 %v626, 0.0
    %v665 = vmax.f32 %v655, 0.0
    %v666 = vmax.f32 %v629, 0.0
    %v667 = vmax.f32 %v658, 0.0
    %v668 = vmul.f32 %v660, %v141
    %v669 = vmul.f32 %v661, %v142
    %v670 = vmul.f32 %v662, %v143
    %v671 = vmul.f32 %v663, %v144
    %v672 = vmul.f32 %v664, %v145
    %v673 = vmul.f32 %v665, %v146
    %v674 = vmul.f32 %v666, %v147
    %v675 = vmul.f32 %v667, %v148
    %676 = vrot.lane.b32.xlu0 %v660, 17
    %v677 = vpop.permute.xlu0 %676
    %678 = vrot.lane.b32.xlu0 %v662, 17
    %v679 = vpop.permute.xlu0 %678
    %680 = vrot.lane.b32.xlu0 %v664, 17
    %v681 = vpop.permute.xlu0 %680
    %682 = vrot.lane.b32.xlu0 %v666, 17
    %v683 = vpop.permute.xlu0 %682
    %684 = vrot.lane.b32.xlu0 %v661, 17
    %v685 = vpop.permute.xlu0 %684
    %686 = vrot.lane.b32.xlu0 %v663, 17
    %v687 = vpop.permute.xlu0 %686
    %688 = vrot.lane.b32.xlu0 %v665, 17
    %v689 = vpop.permute.xlu0 %688
    %690 = vrot.lane.b32.xlu0 %v667, 17
    %v691 = vpop.permute.xlu0 %690
    %v692 = vsel %vm175, %v677, %v685
    %v693 = vsel %vm175, %v679, %v687
    %v694 = vsel %vm175, %v681, %v689
    %v695 = vsel %vm175, %v683, %v691
    %v696 = vsel %vm175, %v685, %v677
    %v697 = vsel %vm175, %v687, %v679
    %v698 = vsel %vm175, %v689, %v681
    %v699 = vsel %vm175, %v691, %v683
    %v700 = vmul.f32 %v696, %v184
    %v701 = vmul.f32 %v692, %v185
    %v702 = vmul.f32 %v697, %v186
    %v703 = vmul.f32 %v693, %v187
    %v704 = vmul.f32 %v698, %v188
    %v705 = vmul.f32 %v694, %v189
    %v706 = vmul.f32 %v699, %v190
    %v707 = vmul.f32 %v695, %v191
    %v708 = vadd.f32 %v668, %v700
    %v709 = vadd.f32 %v669, %v701
    %v710 = vadd.f32 %v670, %v702
    %v711 = vadd.f32 %v671, %v703
    %v712 = vadd.f32 %v672, %v704
    %v713 = vadd.f32 %v673, %v705
    %v714 = vadd.f32 %v674, %v706
    %v715 = vadd.f32 %v675, %v707
    %716 = vrot.lane.b32.xlu0 %v660, 16
    %v717 = vpop.permute.xlu0 %716
    %718 = vrot.lane.b32.xlu0 %v662, 16
    %v719 = vpop.permute.xlu0 %718
    %720 = vrot.lane.b32.xlu0 %v664, 16
    %v721 = vpop.permute.xlu0 %720
    %722 = vrot.lane.b32.xlu0 %v666, 16
    %v723 = vpop.permute.xlu0 %722
    %724 = vrot.lane.b32.xlu0 %v661, 16
    %v725 = vpop.permute.xlu0 %724
    %726 = vrot.lane.b32.xlu0 %v663, 16
    %v727 = vpop.permute.xlu0 %726
    %728 = vrot.lane.b32.xlu0 %v665, 16
    %v729 = vpop.permute.xlu0 %728
    %730 = vrot.lane.b32.xlu0 %v667, 16
    %v731 = vpop.permute.xlu0 %730
    %v732 = vsel %vm224, %v717, %v725
    %v733 = vsel %vm224, %v719, %v727
    %v734 = vsel %vm224, %v721, %v729
    %v735 = vsel %vm224, %v723, %v731
    %v736 = vsel %vm224, %v725, %v717
    %v737 = vsel %vm224, %v727, %v719
    %v738 = vsel %vm224, %v729, %v721
    %v739 = vsel %vm224, %v731, %v723
    %v740 = vmul.f32 %v736, %v234
    %v741 = vmul.f32 %v732, %v235
    %v742 = vmul.f32 %v737, %v236
    %v743 = vmul.f32 %v733, %v237
    %v744 = vmul.f32 %v738, %v238
    %v745 = vmul.f32 %v734, %v239
    %v746 = vmul.f32 %v739, %v240
    %v747 = vmul.f32 %v735, %v241
    %v748 = vadd.f32 %v708, %v740
    %v749 = vadd.f32 %v709, %v741
    %v750 = vadd.f32 %v710, %v742
    %v751 = vadd.f32 %v711, %v743
    %v752 = vadd.f32 %v712, %v744
    %v753 = vadd.f32 %v713, %v745
    %v754 = vadd.f32 %v714, %v746
    %v755 = vadd.f32 %v715, %v747
    %756 = vrot.lane.b32.xlu0 %v660, 15
    %v757 = vpop.permute.xlu0 %756
    %758 = vrot.lane.b32.xlu0 %v662, 15
    %v759 = vpop.permute.xlu0 %758
    %760 = vrot.lane.b32.xlu0 %v664, 15
    %v761 = vpop.permute.xlu0 %760
    %762 = vrot.lane.b32.xlu0 %v666, 15
    %v763 = vpop.permute.xlu0 %762
    %764 = vrot.lane.b32.xlu0 %v661, 15
    %v765 = vpop.permute.xlu0 %764
    %766 = vrot.lane.b32.xlu0 %v663, 15
    %v767 = vpop.permute.xlu0 %766
    %768 = vrot.lane.b32.xlu0 %v665, 15
    %v769 = vpop.permute.xlu0 %768
    %770 = vrot.lane.b32.xlu0 %v667, 15
    %v771 = vpop.permute.xlu0 %770
    %v772 = vsel %vm274, %v757, %v765
    %v773 = vsel %vm274, %v759, %v767
    %v774 = vsel %vm274, %v761, %v769
    %v775 = vsel %vm274, %v763, %v771
    %v776 = vsel %vm274, %v765, %v757
    %v777 = vsel %vm274, %v767, %v759
    %v778 = vsel %vm274, %v769, %v761
    %v779 = vsel %vm274, %v771, %v763
    %v780 = vmul.f32 %v776, %v284
    %v781 = vmul.f32 %v772, %v285
    %v782 = vmul.f32 %v777, %v286
    %v783 = vmul.f32 %v773, %v287
    %v784 = vmul.f32 %v778, %v288
    %v785 = vmul.f32 %v774, %v289
    %v786 = vmul.f32 %v779, %v290
    %v787 = vmul.f32 %v775, %v291
    %v788 = vadd.f32 %v748, %v780
    %v789 = vadd.f32 %v749, %v781
    %v790 = vadd.f32 %v750, %v782
    %v791 = vadd.f32 %v751, %v783
    %v792 = vadd.f32 %v752, %v784
    %v793 = vadd.f32 %v753, %v785
    %v794 = vadd.f32 %v754, %v786
    %v795 = vadd.f32 %v755, %v787
    %796 = vrot.lane.b32.xlu0 %v660, 1
    %v797 = vpop.permute.xlu0 %796
    %798 = vrot.lane.b32.xlu0 %v662, 1
    %v799 = vpop.permute.xlu0 %798
    %800 = vrot.lane.b32.xlu0 %v664, 1
    %v801 = vpop.permute.xlu0 %800
    %802 = vrot.lane.b32.xlu0 %v666, 1
    %v803 = vpop.permute.xlu0 %802
    %804 = vrot.lane.b32.xlu0 %v661, 1
    %v805 = vpop.permute.xlu0 %804
    %806 = vrot.lane.b32.xlu0 %v663, 1
    %v807 = vpop.permute.xlu0 %806
    %808 = vrot.lane.b32.xlu0 %v665, 1
    %v809 = vpop.permute.xlu0 %808
    %810 = vrot.lane.b32.xlu0 %v667, 1
    %v811 = vpop.permute.xlu0 %810
    %v812 = vsel %vm324, %v797, %v805
    %v813 = vsel %vm324, %v799, %v807
    %v814 = vsel %vm324, %v801, %v809
    %v815 = vsel %vm324, %v803, %v811
    %v816 = vsel %vm324, %v805, %v797
    %v817 = vsel %vm324, %v807, %v799
    %v818 = vsel %vm324, %v809, %v801
    %v819 = vsel %vm324, %v811, %v803
    %v820 = vmul.f32 %v816, %v334
    %v821 = vmul.f32 %v812, %v335
    %v822 = vmul.f32 %v817, %v336
    %v823 = vmul.f32 %v813, %v337
    %v824 = vmul.f32 %v818, %v338
    %v825 = vmul.f32 %v814, %v339
    %v826 = vmul.f32 %v819, %v340
    %v827 = vmul.f32 %v815, %v341
    %v828 = vadd.f32 %v788, %v820
    %v829 = vadd.f32 %v789, %v821
    %v830 = vadd.f32 %v790, %v822
    %v831 = vadd.f32 %v791, %v823
    %v832 = vadd.f32 %v792, %v824
    %v833 = vadd.f32 %v793, %v825
    %v834 = vadd.f32 %v794, %v826
    %v835 = vadd.f32 %v795, %v827
    %836 = vrot.lane.b32.xlu0 %v660, 127
    %v837 = vpop.permute.xlu0 %836
    %838 = vrot.lane.b32.xlu0 %v662, 127
    %v839 = vpop.permute.xlu0 %838
    %840 = vrot.lane.b32.xlu0 %v664, 127
    %v841 = vpop.permute.xlu0 %840
    %842 = vrot.lane.b32.xlu0 %v666, 127
    %v843 = vpop.permute.xlu0 %842
    %844 = vrot.lane.b32.xlu0 %v661, 127
    %v845 = vpop.permute.xlu0 %844
    %846 = vrot.lane.b32.xlu0 %v663, 127
    %v847 = vpop.permute.xlu0 %846
    %848 = vrot.lane.b32.xlu0 %v665, 127
    %v849 = vpop.permute.xlu0 %848
    %850 = vrot.lane.b32.xlu0 %v667, 127
    %v851 = vpop.permute.xlu0 %850
    %v852 = vsel %vm374, %v837, %v845
    %v853 = vsel %vm374, %v839, %v847
    %v854 = vsel %vm374, %v841, %v849
    %v855 = vsel %vm374, %v843, %v851
    %v856 = vsel %vm374, %v845, %v837
    %v857 = vsel %vm374, %v847, %v839
    %v858 = vsel %vm374, %v849, %v841
    %v859 = vsel %vm374, %v851, %v843
    %v860 = vmul.f32 %v852, %v384
    %v861 = vmul.f32 %v856, %v385
    %v862 = vmul.f32 %v853, %v386
    %v863 = vmul.f32 %v857, %v387
    %v864 = vmul.f32 %v854, %v388
    %v865 = vmul.f32 %v858, %v389
    %v866 = vmul.f32 %v855, %v390
    %v867 = vmul.f32 %v859, %v391
    %v868 = vadd.f32 %v828, %v860
    %v869 = vadd.f32 %v829, %v861
    %v870 = vadd.f32 %v830, %v862
    %v871 = vadd.f32 %v831, %v863
    %v872 = vadd.f32 %v832, %v864
    %v873 = vadd.f32 %v833, %v865
    %v874 = vadd.f32 %v834, %v866
    %v875 = vadd.f32 %v835, %v867
    %876 = vrot.lane.b32.xlu0 %v660, 113
    %v877 = vpop.permute.xlu0 %876
    %878 = vrot.lane.b32.xlu0 %v662, 113
    %v879 = vpop.permute.xlu0 %878
    %880 = vrot.lane.b32.xlu0 %v664, 113
    %v881 = vpop.permute.xlu0 %880
    %882 = vrot.lane.b32.xlu0 %v666, 113
    %v883 = vpop.permute.xlu0 %882
    %884 = vrot.lane.b32.xlu0 %v661, 113
    %v885 = vpop.permute.xlu0 %884
    %886 = vrot.lane.b32.xlu0 %v663, 113
    %v887 = vpop.permute.xlu0 %886
    %888 = vrot.lane.b32.xlu0 %v665, 113
    %v889 = vpop.permute.xlu0 %888
    %890 = vrot.lane.b32.xlu0 %v667, 113
    %v891 = vpop.permute.xlu0 %890
    %v892 = vsel %vm424, %v877, %v885
    %v893 = vsel %vm424, %v879, %v887
    %v894 = vsel %vm424, %v881, %v889
    %v895 = vsel %vm424, %v883, %v891
    %v896 = vsel %vm424, %v885, %v877
    %v897 = vsel %vm424, %v887, %v879
    %v898 = vsel %vm424, %v889, %v881
    %v899 = vsel %vm424, %v891, %v883
    %v900 = vmul.f32 %v892, %v434
    %v901 = vmul.f32 %v896, %v435
    %v902 = vmul.f32 %v893, %v436
    %v903 = vmul.f32 %v897, %v437
    %v904 = vmul.f32 %v894, %v438
    %v905 = vmul.f32 %v898, %v439
    %v906 = vmul.f32 %v895, %v440
    %v907 = vmul.f32 %v899, %v441
    %v908 = vadd.f32 %v868, %v900
    %v909 = vadd.f32 %v869, %v901
    %v910 = vadd.f32 %v870, %v902
    %v911 = vadd.f32 %v871, %v903
    %v912 = vadd.f32 %v872, %v904
    %v913 = vadd.f32 %v873, %v905
    %v914 = vadd.f32 %v874, %v906
    %v915 = vadd.f32 %v875, %v907
    %916 = vrot.lane.b32.xlu0 %v660, 112
    %v917 = vpop.permute.xlu0 %916
    %918 = vrot.lane.b32.xlu0 %v662, 112
    %v919 = vpop.permute.xlu0 %918
    %920 = vrot.lane.b32.xlu0 %v664, 112
    %v921 = vpop.permute.xlu0 %920
    %922 = vrot.lane.b32.xlu0 %v666, 112
    %v923 = vpop.permute.xlu0 %922
    %924 = vrot.lane.b32.xlu0 %v661, 112
    %v925 = vpop.permute.xlu0 %924
    %926 = vrot.lane.b32.xlu0 %v663, 112
    %v927 = vpop.permute.xlu0 %926
    %928 = vrot.lane.b32.xlu0 %v665, 112
    %v929 = vpop.permute.xlu0 %928
    %930 = vrot.lane.b32.xlu0 %v667, 112
    %v931 = vpop.permute.xlu0 %930
    %v932 = vsel %vm474, %v917, %v925
    %v933 = vsel %vm474, %v919, %v927
    %v934 = vsel %vm474, %v921, %v929
    %v935 = vsel %vm474, %v923, %v931
    %v936 = vsel %vm474, %v925, %v917
    %v937 = vsel %vm474, %v927, %v919
    %v938 = vsel %vm474, %v929, %v921
    %v939 = vsel %vm474, %v931, %v923
    %v940 = vmul.f32 %v932, %v484
    %v941 = vmul.f32 %v936, %v485
    %v942 = vmul.f32 %v933, %v486
    %v943 = vmul.f32 %v937, %v487
    %v944 = vmul.f32 %v934, %v488
    %v945 = vmul.f32 %v938, %v489
    %v946 = vmul.f32 %v935, %v490
    %v947 = vmul.f32 %v939, %v491
    %v948 = vadd.f32 %v908, %v940
    %v949 = vadd.f32 %v909, %v941
    %v950 = vadd.f32 %v910, %v942
    %v951 = vadd.f32 %v911, %v943
    %v952 = vadd.f32 %v912, %v944
    %v953 = vadd.f32 %v913, %v945
    %v954 = vadd.f32 %v914, %v946
    %v955 = vadd.f32 %v915, %v947
    %956 = vrot.lane.b32.xlu0 %v660, 111
    %v957 = vpop.permute.xlu0 %956
    %958 = vrot.lane.b32.xlu0 %v662, 111
    %v959 = vpop.permute.xlu0 %958
    %960 = vrot.lane.b32.xlu0 %v664, 111
    %v961 = vpop.permute.xlu0 %960
    %962 = vrot.lane.b32.xlu0 %v666, 111
    %v963 = vpop.permute.xlu0 %962
    %964 = vrot.lane.b32.xlu0 %v661, 111
    %v965 = vpop.permute.xlu0 %964
    %966 = vrot.lane.b32.xlu0 %v663, 111
    %v967 = vpop.permute.xlu0 %966
    %968 = vrot.lane.b32.xlu0 %v665, 111
    %v969 = vpop.permute.xlu0 %968
    %970 = vrot.lane.b32.xlu0 %v667, 111
    %v971 = vpop.permute.xlu0 %970
    %v972 = vsel %vm524, %v957, %v965
    %v973 = vsel %vm524, %v959, %v967
    %v974 = vsel %vm524, %v961, %v969
    %v975 = vsel %vm524, %v963, %v971
    %v976 = vsel %vm524, %v965, %v957
    %v977 = vsel %vm524, %v967, %v959
    %v978 = vsel %vm524, %v969, %v961
    %v979 = vsel %vm524, %v971, %v963
    %v980 = vmul.f32 %v972, %v534
    %v981 = vmul.f32 %v976, %v535
    %v982 = vmul.f32 %v973, %v536
    %v983 = vmul.f32 %v977, %v537
    %v984 = vmul.f32 %v974, %v538
    %v985 = vmul.f32 %v978, %v539
    %v986 = vmul.f32 %v975, %v540
    %v987 = vmul.f32 %v979, %v541
    %v988 = vadd.f32 %v948, %v980
    %v989 = vadd.f32 %v949, %v981
    %v990 = vadd.f32 %v950, %v982
    %v991 = vadd.f32 %v951, %v983
    %v992 = vadd.f32 %v952, %v984
    %v993 = vadd.f32 %v953, %v985
    %v994 = vadd.f32 %v954, %v986
    %v995 = vadd.f32 %v955, %v987
    %v996 = vadd.f32 %v988, %v559
    %v997 = vadd.f32 %v989, %v560
    %v998 = vadd.f32 %v990, %v561
    %v999 = vadd.f32 %v991, %v562
    %v1000 = vadd.f32 %v992, %v563
    %v1001 = vadd.f32 %v993, %v564
    %v1002 = vadd.f32 %v994, %v565
    %v1003 = vadd.f32 %v995, %v566
    %v1004 = vmax.f32 %v996, 0.0
    %v1005 = vmax.f32 %v997, 0.0
    %v1006 = vmax.f32 %v998, 0.0
    %v1007 = vmax.f32 %v999, 0.0
    %v1008 = vmax.f32 %v1000, 0.0
    %v1009 = vmax.f32 %v1001, 0.0
    %v1010 = vmax.f32 %v1002, 0.0
    %v1011 = vmax.f32 %v1003, 0.0
    %v1012 = vadd.f32 %v1004, %v1005
    %1013 = vadd.xlane.f32.xlu0 %v1012
    %v1014 = vpop.xlane.xlu0 %1013
    %v1015 = vadd.f32 %v1006, %v1007
    %1016 = vadd.xlane.f32.xlu0 %v1015
    %v1017 = vpop.xlane.xlu0 %1016
    %v1018 = vadd.f32 %v1008, %v1009
    %1019 = vadd.xlane.f32.xlu0 %v1018
    %v1020 = vpop.xlane.xlu0 %1019
    %v1021 = vadd.f32 %v1010, %v1011
    %1022 = vadd.xlane.f32.xlu0 %v1021
    %v1023 = vpop.xlane.xlu0 %1022
    %v1024 = vmul.f32 %v1014, 0.00390625
    %v1025 = vmul.f32 %v1017, 0.00390625
    %v1026 = vmul.f32 %v1020, 0.00390625
    %v1027 = vmul.f32 %v1023, 0.00390625
    %vm1028 = vcmask 7168
    %v1029 = vsel %vm1028, %v595, %v1024
    %v1030 = vsel %vm1028, %v596, %v1025
    %v1031 = vsel %vm1028, %v597, %v1026
    %v1032 = vsel %vm1028, %v598, %v1027
    %v1033 = vld [vmem:[%s3] sm:$0xff]
    %1035 = vset.pattern.permute.xlu0 0
    %1036 = vperm.xlu0 %1035, %v46
    %v1037 = vpop.permute.xlu0 %1036
    %vm1039 = vcmask 261120
    %v1041 = vsel %vm1039, %v1033, 0
    %1043 = vmatpush.msra.mxu0 0.0
    %1044 = vmatpush.msra.mxu0 0.0
    %1045 = vmatpush.msra.mxu0 0.0
    %1046 = vmatpush.msra.mxu0 0.0
    %1047 = vmatpush.msra.mxu0 0.0
    %1048 = vmatpush.msra.mxu0 0.0
    %1049 = vmatpush.msra.mxu0 0.0
    %1050 = vmatpush.msra.mxu0 0.0
    %1051 = vmatpush.msra.mxu0 0.0
    %1052 = vmatpush.msra.mxu0 0.0
    %1053 = vmatpush.msra.mxu0 0.0
    %1054 = vmatpush.msra.mxu0 0.0
    %1055 = vmatpush.msra.mxu0 %v1032
    %1056 = vmatpush.msra.mxu0 %v1031
    %1057 = vmatpush.msra.mxu0 %v1030
    %1058 = vmatpush.msra.mxu0 %v1029
    %1059 = vmatmul.f32.gmra.mxu0 %v1041
    %v1060 = vpop.f32.mrf.mxu0
    %v1061 = vadd.f32 %v1037, %v1060
    %1062 = vdwg.mxu0
    %v1063 = vld [vmem:[%s4] sm:$0xff]
    %v1064 = vld [vmem:[%s4 + $0x8] sm:$0xff]
    %v1065 = vld [vmem:[%s4 + $0x10] sm:$0xff]
    %v1066 = vld [vmem:[%s4 + $0x18] sm:$0xff]
    %1067 = vset.pattern.permute.xlu0 1
    %1068 = vperm.xlu0 %1067, %v46
    %v1069 = vpop.permute.xlu0 %1068
    %1072 = vset.pattern.permute.xlu0 1
    %1073 = vperm.xlu0 %1072, %v47
    %v1074 = vpop.permute.xlu0 %1073
    %1077 = vset.pattern.permute.xlu0 1
    %1078 = vperm.xlu0 %1077, %v48
    %v1079 = vpop.permute.xlu0 %1078
    %1082 = vset.pattern.permute.xlu0 1
    %1083 = vperm.xlu0 %1082, %v49
    %v1084 = vpop.permute.xlu0 %1083
    %v1087 = vsel %vm61, %v1063, 0
    %v1090 = vsel %vm61, %v1064, 0
    %v1093 = vsel %vm61, %v1065, 0
    %v1096 = vsel %vm61, %v1066, 0
    %1098 = vmatpush.msra.mxu0 0.0
    %1099 = vmatpush.msra.mxu0 0.0
    %1100 = vmatpush.msra.mxu0 0.0
    %1101 = vmatpush.msra.mxu0 0.0
    %1102 = vmatpush.msra.mxu0 0.0
    %1103 = vmatpush.msra.mxu0 0.0
    %1104 = vmatpush.msra.mxu0 0.0
    %1105 = vmatpush.msra.mxu0 0.0
    %1106 = vmatpush.msra.mxu0 0.0
    %1107 = vmatpush.msra.mxu0 0.0
    %1108 = vmatpush.msra.mxu0 0.0
    %1109 = vmatpush.msra.mxu0 0.0
    %1110 = vmatpush.msra.mxu0 0.0
    %1111 = vmatpush.msra.mxu0 0.0
    %1112 = vmatpush.msra.mxu0 0.0
    %1113 = vmatpush.msra.mxu0 %v1061
    %1114 = vmatmul.f32.gmra.mxu0 %v1087
    %v1115 = vpop.f32.mrf.mxu0
    %v1116 = vadd.f32 %v1069, %v1115
    %1117 = vmatmul.f32.gmra.mxu0 %v1090
    %v1118 = vpop.f32.mrf.mxu0
    %v1119 = vadd.f32 %v1074, %v1118
    %1120 = vmatmul.f32.gmra.mxu0 %v1093
    %v1121 = vpop.f32.mrf.mxu0
    %v1122 = vadd.f32 %v1079, %v1121
    %1123 = vmatmul.f32.gmra.mxu0 %v1096
    %v1124 = vpop.f32.mrf.mxu0
    %v1125 = vadd.f32 %v1084, %v1124
    %1126 = vdwg.mxu0
    %v1127 = vmax.f32 %v1116, 0.0
    %v1128 = vmax.f32 %v1119, 0.0
    %v1129 = vmax.f32 %v1122, 0.0
    %v1130 = vmax.f32 %v1125, 0.0
    %v1131 = vxor.u32 %v1127, 2147483648
    %v1132 = vxor.u32 %v1128, 2147483648
    %v1133 = vxor.u32 %v1129, 2147483648
    %v1134 = vxor.u32 %v1130, 2147483648
    %v1135 = vmul.f32 %v1131, 1.442695
    %v1136 = vpow.pop %v1135
    %v1137 = vmul.f32 %v1132, 1.442695
    %v1138 = vpow.pop %v1137
    %v1139 = vmul.f32 %v1133, 1.442695
    %v1140 = vpow.pop %v1139
    %v1141 = vmul.f32 %v1134, 1.442695
    %v1142 = vpow.pop %v1141
    %v1143 = vadd.f32 %v1136, 1.0
    %v1144 = vadd.f32 %v1138, 1.0
    %v1145 = vadd.f32 %v1140, 1.0
    %v1146 = vadd.f32 %v1142, 1.0
    %v1147 = vrcp.pop %v1143
    %v1148 = vmul.f32 %v1143, %v1147
    %v1149 = vsub.f32 1.0, %v1148
    %v1150 = vmul.f32 %v1147, %v1149
    %v1151 = vadd.f32 %v1147, %v1150
    %vm1152 = vweird.f32 %v1143
    %vm1153 = vweird.f32 %v1147
    %vm1154 = vmor %vm1152, %vm1153
    %v1155 = vsel %vm1154, %v1147, %v1151
    %v1156 = vand.u32 2147483647, %v1143
    %vm1157 = vcmp.eq.f32.partialorder %v1156, 8.507059e+37
    %v1158 = vand.u32 %v1143, 2147483648
    %v1159 = vor.u32 1.1754944e-38, %v1158
    %v1160 = vsel %vm1157, %v1159, %v1155
    %v1161 = vmul.f32 1.0, %v1160
    %v1162 = vrcp.pop %v1144
    %v1163 = vmul.f32 %v1144, %v1162
    %v1164 = vsub.f32 1.0, %v1163
    %v1165 = vmul.f32 %v1162, %v1164
    %v1166 = vadd.f32 %v1162, %v1165
    %vm1167 = vweird.f32 %v1144
    %vm1168 = vweird.f32 %v1162
    %vm1169 = vmor %vm1167, %vm1168
    %v1170 = vsel %vm1169, %v1162, %v1166
    %v1171 = vand.u32 2147483647, %v1144
    %vm1172 = vcmp.eq.f32.partialorder %v1171, 8.507059e+37
    %v1173 = vand.u32 %v1144, 2147483648
    %v1174 = vor.u32 1.1754944e-38, %v1173
    %v1175 = vsel %vm1172, %v1174, %v1170
    %v1176 = vmul.f32 1.0, %v1175
    %v1177 = vrcp.pop %v1145
    %v1178 = vmul.f32 %v1145, %v1177
    %v1179 = vsub.f32 1.0, %v1178
    %v1180 = vmul.f32 %v1177, %v1179
    %v1181 = vadd.f32 %v1177, %v1180
    %vm1182 = vweird.f32 %v1145
    %vm1183 = vweird.f32 %v1177
    %vm1184 = vmor %vm1182, %vm1183
    %v1185 = vsel %vm1184, %v1177, %v1181
    %v1186 = vand.u32 2147483647, %v1145
    %vm1187 = vcmp.eq.f32.partialorder %v1186, 8.507059e+37
    %v1188 = vand.u32 %v1145, 2147483648
    %v1189 = vor.u32 1.1754944e-38, %v1188
    %v1190 = vsel %vm1187, %v1189, %v1185
    %v1191 = vmul.f32 1.0, %v1190
    %v1192 = vrcp.pop %v1146
    %v1193 = vmul.f32 %v1146, %v1192
    %v1194 = vsub.f32 1.0, %v1193
    %v1195 = vmul.f32 %v1192, %v1194
    %v1196 = vadd.f32 %v1192, %v1195
    %vm1197 = vweird.f32 %v1146
    %vm1198 = vweird.f32 %v1192
    %vm1199 = vmor %vm1197, %vm1198
    %v1200 = vsel %vm1199, %v1192, %v1196
    %v1201 = vand.u32 2147483647, %v1146
    %vm1202 = vcmp.eq.f32.partialorder %v1201, 8.507059e+37
    %v1203 = vand.u32 %v1146, 2147483648
    %v1204 = vor.u32 1.1754944e-38, %v1203
    %v1205 = vsel %vm1202, %v1204, %v1200
    %v1206 = vmul.f32 1.0, %v1205
    %v1207 = vld [vmem:[%s5] sm:$0xff]
    %1212 = vset.pattern.permute.xlu0 0
    %1213 = vperm.xlu0 %1212, %v1161
    %v1214 = vpop.permute.xlu0 %1213
    %1215 = vset.pattern.permute.xlu0 0
    %1216 = vperm.xlu0 %1215, %v1176
    %v1217 = vpop.permute.xlu0 %1216
    %1218 = vset.pattern.permute.xlu0 0
    %1219 = vperm.xlu0 %1218, %v1191
    %v1220 = vpop.permute.xlu0 %1219
    %1221 = vset.pattern.permute.xlu0 0
    %1222 = vperm.xlu0 %1221, %v1206
    %v1223 = vpop.permute.xlu0 %1222
    %v1224 = vperm.slane %v1214, %v174
    %v1225 = vadd.s32 %v174, 4294967288
    %v1226 = vperm.slane %v1217, %v1225
    %vm1227 = vcmask 130112
    %v1228 = vsel %vm1227, %v1226, %v1224
    %v1229 = vadd.s32 %v174, 4294967280
    %v1230 = vperm.slane %v1220, %v1229
    %vm1231 = vcmask 195712
    %v1232 = vsel %vm1231, %v1230, %v1228
    %v1233 = vadd.s32 %v174, 4294967272
    %v1234 = vperm.slane %v1223, %v1233
    %vm1235 = vcmask 261312
    %v1236 = vsel %vm1235, %v1234, %v1232
    %vm1237 = vcmask 1042434
    %v1238 = vsel %vm1237, %v1236, %v1236
    %vm1239 = vcmask 1043459
    %v1240 = vsel %vm1239, %v1236, %v1238
    %vm1241 = vcmask 1044484
    %v1242 = vsel %vm1241, %v1236, %v1240
    %vm1243 = vcmask 1045509
    %v1244 = vsel %vm1243, %v1236, %v1242
    %vm1245 = vcmask 1046534
    %v1246 = vsel %vm1245, %v1236, %v1244
    %vm1247 = vcmask 1047559
    %v1248 = vsel %vm1247, %v1236, %v1246
    %v1250 = vmul.f32 %v1207, %v1248
    %s1251 = scalar_lea.vmem [#allocation2], 704
    %v1252 = vld [vmem:[%s1251] sm:$0xff]
    %v1253 = vld [vmem:[%s1251 + $0x8] sm:$0xff]
    %v1255 = vsel %vm1039, %v1250, 0
    %1257 = vmatpush.msra.mxu0 0.0
    %1258 = vmatpush.msra.mxu0 0.0
    %1259 = vmatpush.msra.mxu0 0.0
    %1260 = vmatpush.msra.mxu0 0.0
    %1261 = vmatpush.msra.mxu0 0.0
    %1262 = vmatpush.msra.mxu0 0.0
    %1263 = vmatpush.msra.mxu0 0.0
    %1264 = vmatpush.msra.mxu0 0.0
    %1265 = vmatpush.msra.mxu0 0.0
    %1266 = vmatpush.msra.mxu0 0.0
    %1267 = vmatpush.msra.mxu0 0.0
    %1268 = vmatpush.msra.mxu0 0.0
    %1269 = vmatpush.msra.mxu0 %v581
    %1270 = vmatpush.msra.mxu0 %v579
    %1271 = vmatpush.msra.mxu0 %v577
    %1272 = vmatpush.msra.mxu0 %v575
    %1273 = vmatmul.f32.gmra.mxu0 %v1255
    %v1274 = vpop.f32.mrf.mxu0
    %v1275 = vadd.f32 %v1252, %v1274
    %1276 = vdwg.mxu0
    %1277 = vmatpush.msra.mxu0 0.0
    %1278 = vmatpush.msra.mxu0 0.0
    %1279 = vmatpush.msra.mxu0 0.0
    %1280 = vmatpush.msra.mxu0 0.0
    %1281 = vmatpush.msra.mxu0 0.0
    %1282 = vmatpush.msra.mxu0 0.0
    %1283 = vmatpush.msra.mxu0 0.0
    %1284 = vmatpush.msra.mxu0 0.0
    %1285 = vmatpush.msra.mxu0 0.0
    %1286 = vmatpush.msra.mxu0 0.0
    %1287 = vmatpush.msra.mxu0 0.0
    %1288 = vmatpush.msra.mxu0 0.0
    %1289 = vmatpush.msra.mxu0 %v582
    %1290 = vmatpush.msra.mxu0 %v580
    %1291 = vmatpush.msra.mxu0 %v578
    %1292 = vmatpush.msra.mxu0 %v576
    %1293 = vmatmul.f32.gmra.mxu0 %v1255
    %v1294 = vpop.f32.mrf.mxu0
    %v1295 = vadd.f32 %v1253, %v1294
    %1296 = vdwg.mxu0
    %v1297 = vadd.f32 %v1275, %v50
    %v1298 = vadd.f32 %v1295, %v51
    %1299 = vst [vmem:[%s7] sm:$0xff] %v1297
    %1300 = vst [vmem:[%s7 + $0x8] sm:$0xff] %v1298
    %1301 = vset.pattern.permute.xlu0 1
    %1302 = vperm.xlu0 %1301, %v1161
    %v1303 = vpop.permute.xlu0 %1302
    %1304 = vset.pattern.permute.xlu0 1
    %1305 = vperm.xlu0 %1304, %v1176
    %v1306 = vpop.permute.xlu0 %1305
    %1307 = vset.pattern.permute.xlu0 1
    %1308 = vperm.xlu0 %1307, %v1191
    %v1309 = vpop.permute.xlu0 %1308
    %1310 = vset.pattern.permute.xlu0 1
    %1311 = vperm.xlu0 %1310, %v1206
    %v1312 = vpop.permute.xlu0 %1311
    %v1313 = vperm.slane %v1303, %v174
    %v1314 = vperm.slane %v1306, %v1225
    %v1315 = vsel %vm1227, %v1314, %v1313
    %v1316 = vperm.slane %v1309, %v1229
    %v1317 = vsel %vm1231, %v1316, %v1315
    %v1318 = vperm.slane %v1312, %v1233
    %v1319 = vsel %vm1235, %v1318, %v1317
    %v1320 = vsel %vm1237, %v1319, %v1319
    %v1321 = vsel %vm1239, %v1319, %v1320
    %v1322 = vsel %vm1241, %v1319, %v1321
    %v1323 = vsel %vm1243, %v1319, %v1322
    %v1324 = vsel %vm1245, %v1319, %v1323
    %v1325 = vsel %vm1247, %v1319, %v1324
    %v1327 = vmul.f32 %v1207, %v1325
    %v1328 = vld [vmem:[%s1251] sm:$0xff]
    %v1329 = vld [vmem:[%s1251 + $0x8] sm:$0xff]
    %v1331 = vsel %vm1039, %v1327, 0
    %1333 = vmatpush.msra.mxu0 0.0
    %1334 = vmatpush.msra.mxu0 0.0
    %1335 = vmatpush.msra.mxu0 0.0
    %1336 = vmatpush.msra.mxu0 0.0
    %1337 = vmatpush.msra.mxu0 0.0
    %1338 = vmatpush.msra.mxu0 0.0
    %1339 = vmatpush.msra.mxu0 0.0
    %1340 = vmatpush.msra.mxu0 0.0
    %1341 = vmatpush.msra.mxu0 0.0
    %1342 = vmatpush.msra.mxu0 0.0
    %1343 = vmatpush.msra.mxu0 0.0
    %1344 = vmatpush.msra.mxu0 0.0
    %1345 = vmatpush.msra.mxu0 %v1010
    %1346 = vmatpush.msra.mxu0 %v1008
    %1347 = vmatpush.msra.mxu0 %v1006
    %1348 = vmatpush.msra.mxu0 %v1004
    %1349 = vmatmul.f32.gmra.mxu0 %v1331
    %v1350 = vpop.f32.mrf.mxu0
    %v1351 = vadd.f32 %v1328, %v1350
    %1352 = vdwg.mxu0
    %1353 = vmatpush.msra.mxu0 0.0
    %1354 = vmatpush.msra.mxu0 0.0
    %1355 = vmatpush.msra.mxu0 0.0
    %1356 = vmatpush.msra.mxu0 0.0
    %1357 = vmatpush.msra.mxu0 0.0
    %1358 = vmatpush.msra.mxu0 0.0
    %1359 = vmatpush.msra.mxu0 0.0
    %1360 = vmatpush.msra.mxu0 0.0
    %1361 = vmatpush.msra.mxu0 0.0
    %1362 = vmatpush.msra.mxu0 0.0
    %1363 = vmatpush.msra.mxu0 0.0
    %1364 = vmatpush.msra.mxu0 0.0
    %1365 = vmatpush.msra.mxu0 %v1011
    %1366 = vmatpush.msra.mxu0 %v1009
    %1367 = vmatpush.msra.mxu0 %v1007
    %1368 = vmatpush.msra.mxu0 %v1005
    %1369 = vmatmul.f32.gmra.mxu0 %v1331
    %v1370 = vpop.f32.mrf.mxu0
    %v1371 = vadd.f32 %v1329, %v1370
    %1372 = vdwg.mxu0
    %v1373 = vld [vmem:[%s599] sm:$0xff]
    %v1374 = vld [vmem:[%s599 + $0x8] sm:$0xff]
    %v1375 = vadd.f32 %v1351, %v1373
    %v1376 = vadd.f32 %v1371, %v1374
    %s1377 = scalar_lea.vmem %s7, 16
    %1378 = vst [vmem:[%s1377] sm:$0xff] %v1375
    %1379 = vst [vmem:[%s1377 + $0x8] sm:$0xff] %v1376
    // Predicated region
    $region34: #{mbconv_forward.1} parent=1 // pred_check
      _
    $region35: #{mbconv_forward.1} parent=1 // pred_check_branch
      %1381 = sbr.rel (0) target = $region37
    $region36: #{mbconv_forward.1} parent=1 // pred_region
      _
    $region37: #{mbconv_forward.1} parent=1 // pred_fallthru
      _
    // Predicated region
    $region38: #{mbconv_forward.1} parent=1 // pred_check
      _
    $region39: #{mbconv_forward.1} parent=1 // pred_check_branch
      %1383 = sbr.rel (0) target = $region41
    $region40: #{mbconv_forward.1} parent=1 // pred_region
      _
    $region41: #{mbconv_forward.1} parent=1 // pred_fallthru
      _
    %1384 = vsyncpa [#allocation3], 1

</llo_original>
